<compile_context>
chip_gen: v6e
topology: v6e:2x2x1
jax: 0.10.0
libtpu: 0.0.40
codegen_flags: <defaults>
</compile_context>

<pallas_src>
import jax
import jax.numpy as jnp
import numpy as np
from jax import lax
from jax.experimental import pallas as pl
from jax.experimental.pallas import tpu as pltpu

EPS = 1e-5


def _bn_train(x, gamma, beta):
    """BatchNorm1d forward, training mode (per-feature batch statistics)."""
    mean = jnp.mean(x, axis=0, keepdims=True)
    var = jnp.mean((x - mean) ** 2, axis=0, keepdims=True)
    return (x - mean) * lax.rsqrt(var + EPS) * gamma + beta


def model_kernel(x_ref, g1_ref, b1_ref, g2_ref, b2_ref,
                 w_ih_ref, w_hh_ref, b_g_ref,
                 g3_ref, b3_ref, w_fc_ref, b_fc_ref,
                 out_ref,
                 xproj_ref, hseq_ref):
    N = x_ref.shape[0]
    H = w_hh_ref.shape[0]          # w_hh_cat is (H, 4H)

    # --- two stacked BatchNorm1d(I), fused into ONE reduction pass ---
    # After BN1 the batch mean is exactly b1 (cancels) and the batch variance is
    # g1^2 * var / (var + eps), so BN2 composes analytically.
    x = x_ref[...]
    mu = jnp.mean(x, axis=0, keepdims=True)
    var = jnp.mean((x - mu) ** 2, axis=0, keepdims=True)
    inv1 = lax.rsqrt(var + EPS)
    g1 = g1_ref[...]
    var2 = (g1 * g1) * var * (inv1 * inv1)
    inv2 = lax.rsqrt(var2 + EPS)
    xb = (x - mu) * (inv1 * g1 * inv2 * g2_ref[...]) + b2_ref[...]
    # b1_ref intentionally unused: it cancels exactly in the fused form.

    # --- hoisted input projection for all time steps -> VMEM scratch ---
    xproj_ref[...] = (jnp.dot(xb, w_ih_ref[...], preferred_element_type=jnp.float32)
                      + b_g_ref[...])

    # Recurrent weight held as a value (4 vregs) for the whole unrolled loop.
    w_hh = w_hh_ref[...]           # (H, 4H)

    # --- single-layer LSTM over the N "time steps", statically unrolled ---
    h = jnp.zeros((1, H), jnp.float32)
    c = jnp.zeros((1, H), jnp.float32)
    for t in range(N):
        gates = xproj_ref[t:t + 1, :] + jnp.dot(h, w_hh,
                                                preferred_element_type=jnp.float32)
        sg = 0.5 * jnp.tanh(0.5 * gates) + 0.5     # sigmoid via one EUP tanh
        th = jnp.tanh(gates)
        i_g = sg[:, 0 * H:1 * H]                   # PyTorch gate order: i, f, g, o
        f_g = sg[:, 1 * H:2 * H]
        g_g = th[:, 2 * H:3 * H]
        o_g = sg[:, 3 * H:4 * H]
        c = f_g * c + i_g * g_g
        h = o_g * jnp.tanh(c)
        hseq_ref[t:t + 1, :] = h                   # store hides under next step's work

    # --- BatchNorm1d(hidden_size) + Linear(hidden_size, 1) ---
    hseq = hseq_ref[...]                           # (N, H)
    hb = _bn_train(hseq, g3_ref[...], b3_ref[...])
    # Linear(H, 1) as broadcast multiply + lane reduce (skip MXU round trip).
    out_ref[...] = (jnp.sum(hb * w_fc_ref[...], axis=1, keepdims=True)
                    + b_fc_ref[...])


def run_model(x, p):
    N, _ = x.shape
    H = p["w_hh"].shape[0]
    vmem = lambda: pl.BlockSpec(memory_space=pltpu.MemorySpace.VMEM)
    return pl.pallas_call(
        model_kernel,
        out_shape=jax.ShapeDtypeStruct((N, 1), jnp.float32),
        in_specs=[vmem() for _ in range(12)],
        out_specs=vmem(),
        scratch_shapes=[pltpu.VMEM((N, 4 * H), jnp.float32),   # xproj
                        pltpu.VMEM((N, H), jnp.float32)],      # hseq
    )(x, p["g1"], p["b1"], p["g2"], p["b2"],
      p["w_ih"], p["w_hh"], p["b_g"],
      p["g3"], p["b3"], p["w_fc"], p["b_fc"])


def reference(x, p):
    """Pure-JAX reference mirroring the PyTorch forward pass."""
    N = x.shape[0]
    H = p["w_hh"].shape[0]
    xb = _bn_train(x, p["g1"], p["b1"])
    xb = _bn_train(xb, p["g2"], p["b2"])
    h = jnp.zeros((1, H), jnp.float32)
    c = jnp.zeros((1, H), jnp.float32)
    hs = []
    for t in range(N):
        gates = xb[t:t + 1] @ p["w_ih"] + h @ p["w_hh"] + p["b_g"]
        i_g = jax.nn.sigmoid(gates[:, 0 * H:1 * H])
        f_g = jax.nn.sigmoid(gates[:, 1 * H:2 * H])
        g_g = jnp.tanh(gates[:, 2 * H:3 * H])
        o_g = jax.nn.sigmoid(gates[:, 3 * H:4 * H])
        c = f_g * c + i_g * g_g
        h = o_g * jnp.tanh(c)
        hs.append(h)
    hseq = jnp.concatenate(hs, axis=0)
    hb = _bn_train(hseq, p["g3"], p["b3"])
    return hb @ p["w_fc"].T + p["b_fc"]


def init_params(key, input_size, hidden_size):
    ks = jax.random.split(key, 8)
    k_rnn = 1.0 / np.sqrt(hidden_size)
    k_fc = 1.0 / np.sqrt(hidden_size)
    # Per-gate LSTM weights (PyTorch order i, f, g, o), stored transposed for the
    # x @ W layout, then fused into lane-dense concatenated matrices.
    w_ih = jax.random.uniform(ks[0], (4, input_size, hidden_size), jnp.float32, -k_rnn, k_rnn)
    w_hh = jax.random.uniform(ks[1], (4, hidden_size, hidden_size), jnp.float32, -k_rnn, k_rnn)
    b_ih = jax.random.uniform(ks[2], (4, hidden_size), jnp.float32, -k_rnn, k_rnn)
    b_hh = jax.random.uniform(ks[3], (4, hidden_size), jnp.float32, -k_rnn, k_rnn)
    w_ih_cat = jnp.concatenate([w_ih[g] for g in range(4)], axis=1)   # (I, 4H)
    w_hh_cat = jnp.concatenate([w_hh[g] for g in range(4)], axis=1)   # (H, 4H)
    b_cat = (b_ih + b_hh).reshape(1, 4 * hidden_size)                 # (1, 4H)
    # Final Linear kept in PyTorch layout (out_features=1, in_features=H) as a row.
    w_fc = jax.random.uniform(ks[4], (1, hidden_size), jnp.float32, -k_fc, k_fc)
    b_fc = jax.random.uniform(ks[5], (1, 1), jnp.float32, -k_fc, k_fc)
    return {
        # BatchNorm affine params at PyTorch init (weight=1, bias=0).
        "g1": jnp.ones((1, input_size), jnp.float32),
        "b1": jnp.zeros((1, input_size), jnp.float32),
        "g2": jnp.ones((1, input_size), jnp.float32),
        "b2": jnp.zeros((1, input_size), jnp.float32),
        "g3": jnp.ones((1, hidden_size), jnp.float32),
        "b3": jnp.zeros((1, hidden_size), jnp.float32),
        "w_ih": w_ih_cat,
        "w_hh": w_hh_cat,
        "b_g": b_cat,          # combined (b_ih + b_hh) fused across gates
        "w_fc": w_fc,
        "b_fc": b_fc,
    }


if __name__ == "__main__":
    N, INPUT_SIZE, HIDDEN_SIZE = 16, 8, 32

    key = jax.random.PRNGKey(0)
    k_params, k_x = jax.random.split(key)
    params = init_params(k_params, INPUT_SIZE, HIDDEN_SIZE)
    x = jax.random.normal(k_x, (N, INPUT_SIZE), jnp.float32)

    out = jax.block_until_ready(run_model(x, params))

    ref = reference(x, params)
    assert out.shape == (N, 1), out.shape
    np.testing.assert_allclose(np.asarray(out), np.asarray(ref), rtol=1e-4, atol=1e-4)

    print("KERNEL_OK")
</pallas_src>

<mosaic_0001>
module attributes {stable_mosaic.version = 11 : i64} {
  func.func @model_kernel(%arg0: memref<16x8xf32, #tpu.memory_space<vmem>>, %arg1: memref<1x8xf32, #tpu.memory_space<vmem>>, %arg2: memref<1x8xf32, #tpu.memory_space<vmem>>, %arg3: memref<1x8xf32, #tpu.memory_space<vmem>>, %arg4: memref<1x8xf32, #tpu.memory_space<vmem>>, %arg5: memref<8x128xf32, #tpu.memory_space<vmem>>, %arg6: memref<32x128xf32, #tpu.memory_space<vmem>>, %arg7: memref<1x128xf32, #tpu.memory_space<vmem>>, %arg8: memref<1x32xf32, #tpu.memory_space<vmem>>, %arg9: memref<1x32xf32, #tpu.memory_space<vmem>>, %arg10: memref<1x32xf32, #tpu.memory_space<vmem>>, %arg11: memref<1x1xf32, #tpu.memory_space<vmem>>, %arg12: memref<16x1xf32, #tpu.memory_space<vmem>>, %arg13: memref<16x128xf32, #tpu.memory_space<vmem>>, %arg14: memref<16x32xf32, #tpu.memory_space<vmem>>) attributes {dimension_semantics = [], scalar_prefetch = 0 : i64, scratch_operands = 2 : i64, tpu.core_type = #tpu.core_type<tc>} {
    %c0 = arith.constant 0 : index
    %c0_0 = arith.constant 0 : index
    %0 = vector.load %arg0[%c0, %c0_0] : memref<16x8xf32, #tpu.memory_space<vmem>>, vector<16x8xf32>
    %cst = arith.constant dense<0.000000e+00> : vector<8xf32>
    %1 = vector.multi_reduction <add>, %0, %cst [0] : vector<16x8xf32> to vector<8xf32>
    %2 = vector.shape_cast %1 : vector<8xf32> to vector<1x8xf32>
    %cst_1 = arith.constant 1.600000e+01 : f32
    %3 = vector.broadcast %cst_1 : f32 to vector<1x8xf32>
    %4 = arith.divf %2, %3 : vector<1x8xf32>
    %5 = vector.broadcast %4 : vector<1x8xf32> to vector<16x8xf32>
    %6 = arith.subf %0, %5 : vector<16x8xf32>
    %7 = arith.mulf %6, %6 : vector<16x8xf32>
    %cst_2 = arith.constant dense<0.000000e+00> : vector<8xf32>
    %8 = vector.multi_reduction <add>, %7, %cst_2 [0] : vector<16x8xf32> to vector<8xf32>
    %9 = vector.shape_cast %8 : vector<8xf32> to vector<1x8xf32>
    %cst_3 = arith.constant 1.600000e+01 : f32
    %10 = vector.broadcast %cst_3 : f32 to vector<1x8xf32>
    %11 = arith.divf %9, %10 : vector<1x8xf32>
    %cst_4 = arith.constant 9.99999974E-6 : f32
    %12 = vector.broadcast %cst_4 : f32 to vector<1x8xf32>
    %13 = arith.addf %11, %12 : vector<1x8xf32>
    %14 = math.rsqrt %13 : vector<1x8xf32>
    %c0_5 = arith.constant 0 : index
    %c0_6 = arith.constant 0 : index
    %15 = vector.load %arg1[%c0_5, %c0_6] : memref<1x8xf32, #tpu.memory_space<vmem>>, vector<1x8xf32>
    %16 = arith.mulf %15, %15 : vector<1x8xf32>
    %17 = arith.mulf %16, %11 : vector<1x8xf32>
    %18 = arith.mulf %14, %14 : vector<1x8xf32>
    %19 = arith.mulf %17, %18 : vector<1x8xf32>
    %cst_7 = arith.constant 9.99999974E-6 : f32
    %20 = vector.broadcast %cst_7 : f32 to vector<1x8xf32>
    %21 = arith.addf %19, %20 : vector<1x8xf32>
    %22 = math.rsqrt %21 : vector<1x8xf32>
    %23 = vector.broadcast %4 : vector<1x8xf32> to vector<16x8xf32>
    %24 = arith.subf %0, %23 : vector<16x8xf32>
    %25 = arith.mulf %14, %15 : vector<1x8xf32>
    %26 = arith.mulf %25, %22 : vector<1x8xf32>
    %c0_8 = arith.constant 0 : index
    %c0_9 = arith.constant 0 : index
    %27 = vector.load %arg3[%c0_8, %c0_9] : memref<1x8xf32, #tpu.memory_space<vmem>>, vector<1x8xf32>
    %28 = arith.mulf %26, %27 : vector<1x8xf32>
    %29 = vector.broadcast %28 : vector<1x8xf32> to vector<16x8xf32>
    %30 = arith.mulf %24, %29 : vector<16x8xf32>
    %c0_10 = arith.constant 0 : index
    %c0_11 = arith.constant 0 : index
    %31 = vector.load %arg4[%c0_10, %c0_11] : memref<1x8xf32, #tpu.memory_space<vmem>>, vector<1x8xf32>
    %32 = vector.broadcast %31 : vector<1x8xf32> to vector<16x8xf32>
    %33 = arith.addf %30, %32 : vector<16x8xf32>
    %c0_12 = arith.constant 0 : index
    %c0_13 = arith.constant 0 : index
    %34 = vector.load %arg5[%c0_12, %c0_13] : memref<8x128xf32, #tpu.memory_space<vmem>>, vector<8x128xf32>
    %cst_14 = arith.constant dense<0.000000e+00> : vector<16x128xf32>
    %35 = tpu.matmul %33, %34, %cst_14 {dimension_numbers = #tpu.dot_dimension_numbers<[1], [0], [0], [1], [0, 0, 1, 1], [], []>} : vector<16x8xf32>, vector<8x128xf32>, vector<16x128xf32> -> vector<16x128xf32>
    %c0_15 = arith.constant 0 : index
    %c0_16 = arith.constant 0 : index
    %36 = vector.load %arg7[%c0_15, %c0_16] : memref<1x128xf32, #tpu.memory_space<vmem>>, vector<1x128xf32>
    %37 = vector.broadcast %36 : vector<1x128xf32> to vector<16x128xf32>
    %38 = arith.addf %35, %37 : vector<16x128xf32>
    %c0_17 = arith.constant 0 : index
    %c0_18 = arith.constant 0 : index
    %39 = vector.load %arg13[%c0_17, %c0_18] : memref<16x128xf32, #tpu.memory_space<vmem>>, vector<16x128xf32>
    tpu.vector_store %arg13[%c0_17, %c0_18], %38 {strides = array<i32>} : memref<16x128xf32, #tpu.memory_space<vmem>>, vector<16x128xf32>,
    %c0_19 = arith.constant 0 : index
    %c0_20 = arith.constant 0 : index
    %40 = vector.load %arg6[%c0_19, %c0_20] : memref<32x128xf32, #tpu.memory_space<vmem>>, vector<32x128xf32>
    %cst_21 = arith.constant 0.000000e+00 : f32
    %41 = vector.broadcast %cst_21 : f32 to vector<1x32xf32>
    %cst_22 = arith.constant 0.000000e+00 : f32
    %42 = vector.broadcast %cst_22 : f32 to vector<1x32xf32>
    %c0_23 = arith.constant 0 : index
    %c0_24 = arith.constant 0 : index
    %43 = vector.load %arg13[%c0_23, %c0_24] : memref<16x128xf32, #tpu.memory_space<vmem>>, vector<1x128xf32>
    %cst_25 = arith.constant dense<0.000000e+00> : vector<1x128xf32>
    %44 = tpu.matmul %41, %40, %cst_25 {dimension_numbers = #tpu.dot_dimension_numbers<[1], [0], [0], [1], [0, 0, 1, 1], [], []>} : vector<1x32xf32>, vector<32x128xf32>, vector<1x128xf32> -> vector<1x128xf32>
    %45 = arith.addf %43, %44 : vector<1x128xf32>
    %cst_26 = arith.constant 5.000000e-01 : f32
    %46 = vector.broadcast %cst_26 : f32 to vector<1x128xf32>
    %47 = arith.mulf %46, %45 : vector<1x128xf32>
    %48 = math.tanh %47 : vector<1x128xf32>
    %cst_27 = arith.constant 5.000000e-01 : f32
    %49 = vector.broadcast %cst_27 : f32 to vector<1x128xf32>
    %50 = arith.mulf %49, %48 : vector<1x128xf32>
    %cst_28 = arith.constant 5.000000e-01 : f32
    %51 = vector.broadcast %cst_28 : f32 to vector<1x128xf32>
    %52 = arith.addf %50, %51 : vector<1x128xf32>
    %53 = math.tanh %45 : vector<1x128xf32>
    %54 = vector.extract_strided_slice %52 {offsets = [0, 0], sizes = [1, 32], strides = [1, 1]} : vector<1x128xf32> to vector<1x32xf32>
    %55 = vector.extract_strided_slice %52 {offsets = [0, 32], sizes = [1, 32], strides = [1, 1]} : vector<1x128xf32> to vector<1x32xf32>
    %56 = vector.extract_strided_slice %53 {offsets = [0, 64], sizes = [1, 32], strides = [1, 1]} : vector<1x128xf32> to vector<1x32xf32>
    %57 = vector.extract_strided_slice %52 {offsets = [0, 96], sizes = [1, 32], strides = [1, 1]} : vector<1x128xf32> to vector<1x32xf32>
    %58 = arith.mulf %55, %42 : vector<1x32xf32>
    %59 = arith.mulf %54, %56 : vector<1x32xf32>
    %60 = arith.addf %58, %59 : vector<1x32xf32>
    %61 = math.tanh %60 : vector<1x32xf32>
    %62 = arith.mulf %57, %61 : vector<1x32xf32>
    %c0_29 = arith.constant 0 : index
    %c0_30 = arith.constant 0 : index
    %63 = vector.load %arg14[%c0_29, %c0_30] : memref<16x32xf32, #tpu.memory_space<vmem>>, vector<1x32xf32>
    tpu.vector_store %arg14[%c0_29, %c0_30], %62 {strides = array<i32>} : memref<16x32xf32, #tpu.memory_space<vmem>>, vector<1x32xf32>,
    %c1 = arith.constant 1 : index
    %c0_31 = arith.constant 0 : index
    %64 = vector.load %arg13[%c1, %c0_31] : memref<16x128xf32, #tpu.memory_space<vmem>>, vector<1x128xf32>
    %cst_32 = arith.constant dense<0.000000e+00> : vector<1x128xf32>
    %65 = tpu.matmul %62, %40, %cst_32 {dimension_numbers = #tpu.dot_dimension_numbers<[1], [0], [0], [1], [0, 0, 1, 1], [], []>} : vector<1x32xf32>, vector<32x128xf32>, vector<1x128xf32> -> vector<1x128xf32>
    %66 = arith.addf %64, %65 : vector<1x128xf32>
    %cst_33 = arith.constant 5.000000e-01 : f32
    %67 = vector.broadcast %cst_33 : f32 to vector<1x128xf32>
    %68 = arith.mulf %67, %66 : vector<1x128xf32>
    %69 = math.tanh %68 : vector<1x128xf32>
    %cst_34 = arith.constant 5.000000e-01 : f32
    %70 = vector.broadcast %cst_34 : f32 to vector<1x128xf32>
    %71 = arith.mulf %70, %69 : vector<1x128xf32>
    %cst_35 = arith.constant 5.000000e-01 : f32
    %72 = vector.broadcast %cst_35 : f32 to vector<1x128xf32>
    %73 = arith.addf %71, %72 : vector<1x128xf32>
    %74 = math.tanh %66 : vector<1x128xf32>
    %75 = vector.extract_strided_slice %73 {offsets = [0, 0], sizes = [1, 32], strides = [1, 1]} : vector<1x128xf32> to vector<1x32xf32>
    %76 = vector.extract_strided_slice %73 {offsets = [0, 32], sizes = [1, 32], strides = [1, 1]} : vector<1x128xf32> to vector<1x32xf32>
    %77 = vector.extract_strided_slice %74 {offsets = [0, 64], sizes = [1, 32], strides = [1, 1]} : vector<1x128xf32> to vector<1x32xf32>
    %78 = vector.extract_strided_slice %73 {offsets = [0, 96], sizes = [1, 32], strides = [1, 1]} : vector<1x128xf32> to vector<1x32xf32>
    %79 = arith.mulf %76, %60 : vector<1x32xf32>
    %80 = arith.mulf %75, %77 : vector<1x32xf32>
    %81 = arith.addf %79, %80 : vector<1x32xf32>
    %82 = math.tanh %81 : vector<1x32xf32>
    %83 = arith.mulf %78, %82 : vector<1x32xf32>
    %c1_36 = arith.constant 1 : index
    %c0_37 = arith.constant 0 : index
    %84 = vector.load %arg14[%c1_36, %c0_37] : memref<16x32xf32, #tpu.memory_space<vmem>>, vector<1x32xf32>
    tpu.vector_store %arg14[%c1_36, %c0_37], %83 {strides = array<i32>} : memref<16x32xf32, #tpu.memory_space<vmem>>, vector<1x32xf32>,
    %c2 = arith.constant 2 : index
    %c0_38 = arith.constant 0 : index
    %85 = vector.load %arg13[%c2, %c0_38] : memref<16x128xf32, #tpu.memory_space<vmem>>, vector<1x128xf32>
    %cst_39 = arith.constant dense<0.000000e+00> : vector<1x128xf32>
    %86 = tpu.matmul %83, %40, %cst_39 {dimension_numbers = #tpu.dot_dimension_numbers<[1], [0], [0], [1], [0, 0, 1, 1], [], []>} : vector<1x32xf32>, vector<32x128xf32>, vector<1x128xf32> -> vector<1x128xf32>
    %87 = arith.addf %85, %86 : vector<1x128xf32>
    %cst_40 = arith.constant 5.000000e-01 : f32
    %88 = vector.broadcast %cst_40 : f32 to vector<1x128xf32>
    %89 = arith.mulf %88, %87 : vector<1x128xf32>
    %90 = math.tanh %89 : vector<1x128xf32>
    %cst_41 = arith.constant 5.000000e-01 : f32
    %91 = vector.broadcast %cst_41 : f32 to vector<1x128xf32>
    %92 = arith.mulf %91, %90 : vector<1x128xf32>
    %cst_42 = arith.constant 5.000000e-01 : f32
    %93 = vector.broadcast %cst_42 : f32 to vector<1x128xf32>
    %94 = arith.addf %92, %93 : vector<1x128xf32>
    %95 = math.tanh %87 : vector<1x128xf32>
    %96 = vector.extract_strided_slice %94 {offsets = [0, 0], sizes = [1, 32], strides = [1, 1]} : vector<1x128xf32> to vector<1x32xf32>
    %97 = vector.extract_strided_slice %94 {offsets = [0, 32], sizes = [1, 32], strides = [1, 1]} : vector<1x128xf32> to vector<1x32xf32>
    %98 = vector.extract_strided_slice %95 {offsets = [0, 64], sizes = [1, 32], strides = [1, 1]} : vector<1x128xf32> to vector<1x32xf32>
    %99 = vector.extract_strided_slice %94 {offsets = [0, 96], sizes = [1, 32], strides = [1, 1]} : vector<1x128xf32> to vector<1x32xf32>
    %100 = arith.mulf %97, %81 : vector<1x32xf32>
    %101 = arith.mulf %96, %98 : vector<1x32xf32>
    %102 = arith.addf %100, %101 : vector<1x32xf32>
    %103 = math.tanh %102 : vector<1x32xf32>
    %104 = arith.mulf %99, %103 : vector<1x32xf32>
    %c2_43 = arith.constant 2 : index
    %c0_44 = arith.constant 0 : index
    %105 = vector.load %arg14[%c2_43, %c0_44] : memref<16x32xf32, #tpu.memory_space<vmem>>, vector<1x32xf32>
    tpu.vector_store %arg14[%c2_43, %c0_44], %104 {strides = array<i32>} : memref<16x32xf32, #tpu.memory_space<vmem>>, vector<1x32xf32>,
    %c3 = arith.constant 3 : index
    %c0_45 = arith.constant 0 : index
    %106 = vector.load %arg13[%c3, %c0_45] : memref<16x128xf32, #tpu.memory_space<vmem>>, vector<1x128xf32>
    %cst_46 = arith.constant dense<0.000000e+00> : vector<1x128xf32>
    %107 = tpu.matmul %104, %40, %cst_46 {dimension_numbers = #tpu.dot_dimension_numbers<[1], [0], [0], [1], [0, 0, 1, 1], [], []>} : vector<1x32xf32>, vector<32x128xf32>, vector<1x128xf32> -> vector<1x128xf32>
    %108 = arith.addf %106, %107 : vector<1x128xf32>
    %cst_47 = arith.constant 5.000000e-01 : f32
    %109 = vector.broadcast %cst_47 : f32 to vector<1x128xf32>
    %110 = arith.mulf %109, %108 : vector<1x128xf32>
    %111 = math.tanh %110 : vector<1x128xf32>
    %cst_48 = arith.constant 5.000000e-01 : f32
    %112 = vector.broadcast %cst_48 : f32 to vector<1x128xf32>
    %113 = arith.mulf %112, %111 : vector<1x128xf32>
    %cst_49 = arith.constant 5.000000e-01 : f32
    %114 = vector.broadcast %cst_49 : f32 to vector<1x128xf32>
    %115 = arith.addf %113, %114 : vector<1x128xf32>
    %116 = math.tanh %108 : vector<1x128xf32>
    %117 = vector.extract_strided_slice %115 {offsets = [0, 0], sizes = [1, 32], strides = [1, 1]} : vector<1x128xf32> to vector<1x32xf32>
    %118 = vector.extract_strided_slice %115 {offsets = [0, 32], sizes = [1, 32], strides = [1, 1]} : vector<1x128xf32> to vector<1x32xf32>
    %119 = vector.extract_strided_slice %116 {offsets = [0, 64], sizes = [1, 32], strides = [1, 1]} : vector<1x128xf32> to vector<1x32xf32>
    %120 = vector.extract_strided_slice %115 {offsets = [0, 96], sizes = [1, 32], strides = [1, 1]} : vector<1x128xf32> to vector<1x32xf32>
    %121 = arith.mulf %118, %102 : vector<1x32xf32>
    %122 = arith.mulf %117, %119 : vector<1x32xf32>
    %123 = arith.addf %121, %122 : vector<1x32xf32>
    %124 = math.tanh %123 : vector<1x32xf32>
    %125 = arith.mulf %120, %124 : vector<1x32xf32>
    %c3_50 = arith.constant 3 : index
    %c0_51 = arith.constant 0 : index
    %126 = vector.load %arg14[%c3_50, %c0_51] : memref<16x32xf32, #tpu.memory_space<vmem>>, vector<1x32xf32>
    tpu.vector_store %arg14[%c3_50, %c0_51], %125 {strides = array<i32>} : memref<16x32xf32, #tpu.memory_space<vmem>>, vector<1x32xf32>,
    %c4 = arith.constant 4 : index
    %c0_52 = arith.constant 0 : index
    %127 = vector.load %arg13[%c4, %c0_52] : memref<16x128xf32, #tpu.memory_space<vmem>>, vector<1x128xf32>
    %cst_53 = arith.constant dense<0.000000e+00> : vector<1x128xf32>
    %128 = tpu.matmul %125, %40, %cst_53 {dimension_numbers = #tpu.dot_dimension_numbers<[1], [0], [0], [1], [0, 0, 1, 1], [], []>} : vector<1x32xf32>, vector<32x128xf32>, vector<1x128xf32> -> vector<1x128xf32>
    %129 = arith.addf %127, %128 : vector<1x128xf32>
    %cst_54 = arith.constant 5.000000e-01 : f32
    %130 = vector.broadcast %cst_54 : f32 to vector<1x128xf32>
    %131 = arith.mulf %130, %129 : vector<1x128xf32>
    %132 = math.tanh %131 : vector<1x128xf32>
    %cst_55 = arith.constant 5.000000e-01 : f32
    %133 = vector.broadcast %cst_55 : f32 to vector<1x128xf32>
    %134 = arith.mulf %133, %132 : vector<1x128xf32>
    %cst_56 = arith.constant 5.000000e-01 : f32
    %135 = vector.broadcast %cst_56 : f32 to vector<1x128xf32>
    %136 = arith.addf %134, %135 : vector<1x128xf32>
    %137 = math.tanh %129 : vector<1x128xf32>
    %138 = vector.extract_strided_slice %136 {offsets = [0, 0], sizes = [1, 32], strides = [1, 1]} : vector<1x128xf32> to vector<1x32xf32>
    %139 = vector.extract_strided_slice %136 {offsets = [0, 32], sizes = [1, 32], strides = [1, 1]} : vector<1x128xf32> to vector<1x32xf32>
    %140 = vector.extract_strided_slice %137 {offsets = [0, 64], sizes = [1, 32], strides = [1, 1]} : vector<1x128xf32> to vector<1x32xf32>
    %141 = vector.extract_strided_slice %136 {offsets = [0, 96], sizes = [1, 32], strides = [1, 1]} : vector<1x128xf32> to vector<1x32xf32>
    %142 = arith.mulf %139, %123 : vector<1x32xf32>
    %143 = arith.mulf %138, %140 : vector<1x32xf32>
    %144 = arith.addf %142, %143 : vector<1x32xf32>
    %145 = math.tanh %144 : vector<1x32xf32>
    %146 = arith.mulf %141, %145 : vector<1x32xf32>
    %c4_57 = arith.constant 4 : index
    %c0_58 = arith.constant 0 : index
    %147 = vector.load %arg14[%c4_57, %c0_58] : memref<16x32xf32, #tpu.memory_space<vmem>>, vector<1x32xf32>
    tpu.vector_store %arg14[%c4_57, %c0_58], %146 {strides = array<i32>} : memref<16x32xf32, #tpu.memory_space<vmem>>, vector<1x32xf32>,
    %c5 = arith.constant 5 : index
    %c0_59 = arith.constant 0 : index
    %148 = vector.load %arg13[%c5, %c0_59] : memref<16x128xf32, #tpu.memory_space<vmem>>, vector<1x128xf32>
    %cst_60 = arith.constant dense<0.000000e+00> : vector<1x128xf32>
    %149 = tpu.matmul %146, %40, %cst_60 {dimension_numbers = #tpu.dot_dimension_numbers<[1], [0], [0], [1], [0, 0, 1, 1], [], []>} : vector<1x32xf32>, vector<32x128xf32>, vector<1x128xf32> -> vector<1x128xf32>
    %150 = arith.addf %148, %149 : vector<1x128xf32>
    %cst_61 = arith.constant 5.000000e-01 : f32
    %151 = vector.broadcast %cst_61 : f32 to vector<1x128xf32>
    %152 = arith.mulf %151, %150 : vector<1x128xf32>
    %153 = math.tanh %152 : vector<1x128xf32>
    %cst_62 = arith.constant 5.000000e-01 : f32
    %154 = vector.broadcast %cst_62 : f32 to vector<1x128xf32>
    %155 = arith.mulf %154, %153 : vector<1x128xf32>
    %cst_63 = arith.constant 5.000000e-01 : f32
    %156 = vector.broadcast %cst_63 : f32 to vector<1x128xf32>
    %157 = arith.addf %155, %156 : vector<1x128xf32>
    %158 = math.tanh %150 : vector<1x128xf32>
    %159 = vector.extract_strided_slice %157 {offsets = [0, 0], sizes = [1, 32], strides = [1, 1]} : vector<1x128xf32> to vector<1x32xf32>
    %160 = vector.extract_strided_slice %157 {offsets = [0, 32], sizes = [1, 32], strides = [1, 1]} : vector<1x128xf32> to vector<1x32xf32>
    %161 = vector.extract_strided_slice %158 {offsets = [0, 64], sizes = [1, 32], strides = [1, 1]} : vector<1x128xf32> to vector<1x32xf32>
    %162 = vector.extract_strided_slice %157 {offsets = [0, 96], sizes = [1, 32], strides = [1, 1]} : vector<1x128xf32> to vector<1x32xf32>
    %163 = arith.mulf %160, %144 : vector<1x32xf32>
    %164 = arith.mulf %159, %161 : vector<1x32xf32>
    %165 = arith.addf %163, %164 : vector<1x32xf32>
    %166 = math.tanh %165 : vector<1x32xf32>
    %167 = arith.mulf %162, %166 : vector<1x32xf32>
    %c5_64 = arith.constant 5 : index
    %c0_65 = arith.constant 0 : index
    %168 = vector.load %arg14[%c5_64, %c0_65] : memref<16x32xf32, #tpu.memory_space<vmem>>, vector<1x32xf32>
    tpu.vector_store %arg14[%c5_64, %c0_65], %167 {strides = array<i32>} : memref<16x32xf32, #tpu.memory_space<vmem>>, vector<1x32xf32>,
    %c6 = arith.constant 6 : index
    %c0_66 = arith.constant 0 : index
    %169 = vector.load %arg13[%c6, %c0_66] : memref<16x128xf32, #tpu.memory_space<vmem>>, vector<1x128xf32>
    %cst_67 = arith.constant dense<0.000000e+00> : vector<1x128xf32>
    %170 = tpu.matmul %167, %40, %cst_67 {dimension_numbers = #tpu.dot_dimension_numbers<[1], [0], [0], [1], [0, 0, 1, 1], [], []>} : vector<1x32xf32>, vector<32x128xf32>, vector<1x128xf32> -> vector<1x128xf32>
    %171 = arith.addf %169, %170 : vector<1x128xf32>
    %cst_68 = arith.constant 5.000000e-01 : f32
    %172 = vector.broadcast %cst_68 : f32 to vector<1x128xf32>
    %173 = arith.mulf %172, %171 : vector<1x128xf32>
    %174 = math.tanh %173 : vector<1x128xf32>
    %cst_69 = arith.constant 5.000000e-01 : f32
    %175 = vector.broadcast %cst_69 : f32 to vector<1x128xf32>
    %176 = arith.mulf %175, %174 : vector<1x128xf32>
    %cst_70 = arith.constant 5.000000e-01 : f32
    %177 = vector.broadcast %cst_70 : f32 to vector<1x128xf32>
    %178 = arith.addf %176, %177 : vector<1x128xf32>
    %179 = math.tanh %171 : vector<1x128xf32>
    %180 = vector.extract_strided_slice %178 {offsets = [0, 0], sizes = [1, 32], strides = [1, 1]} : vector<1x128xf32> to vector<1x32xf32>
    %181 = vector.extract_strided_slice %178 {offsets = [0, 32], sizes = [1, 32], strides = [1, 1]} : vector<1x128xf32> to vector<1x32xf32>
    %182 = vector.extract_strided_slice %179 {offsets = [0, 64], sizes = [1, 32], strides = [1, 1]} : vector<1x128xf32> to vector<1x32xf32>
    %183 = vector.extract_strided_slice %178 {offsets = [0, 96], sizes = [1, 32], strides = [1, 1]} : vector<1x128xf32> to vector<1x32xf32>
    %184 = arith.mulf %181, %165 : vector<1x32xf32>
    %185 = arith.mulf %180, %182 : vector<1x32xf32>
    %186 = arith.addf %184, %185 : vector<1x32xf32>
    %187 = math.tanh %186 : vector<1x32xf32>
    %188 = arith.mulf %183, %187 : vector<1x32xf32>
    %c6_71 = arith.constant 6 : index
    %c0_72 = arith.constant 0 : index
    %189 = vector.load %arg14[%c6_71, %c0_72] : memref<16x32xf32, #tpu.memory_space<vmem>>, vector<1x32xf32>
    tpu.vector_store %arg14[%c6_71, %c0_72], %188 {strides = array<i32>} : memref<16x32xf32, #tpu.memory_space<vmem>>, vector<1x32xf32>,
    %c7 = arith.constant 7 : index
    %c0_73 = arith.constant 0 : index
    %190 = vector.load %arg13[%c7, %c0_73] : memref<16x128xf32, #tpu.memory_space<vmem>>, vector<1x128xf32>
    %cst_74 = arith.constant dense<0.000000e+00> : vector<1x128xf32>
    %191 = tpu.matmul %188, %40, %cst_74 {dimension_numbers = #tpu.dot_dimension_numbers<[1], [0], [0], [1], [0, 0, 1, 1], [], []>} : vector<1x32xf32>, vector<32x128xf32>, vector<1x128xf32> -> vector<1x128xf32>
    %192 = arith.addf %190, %191 : vector<1x128xf32>
    %cst_75 = arith.constant 5.000000e-01 : f32
    %193 = vector.broadcast %cst_75 : f32 to vector<1x128xf32>
    %194 = arith.mulf %193, %192 : vector<1x128xf32>
    %195 = math.tanh %194 : vector<1x128xf32>
    %cst_76 = arith.constant 5.000000e-01 : f32
    %196 = vector.broadcast %cst_76 : f32 to vector<1x128xf32>
    %197 = arith.mulf %196, %195 : vector<1x128xf32>
    %cst_77 = arith.constant 5.000000e-01 : f32
    %198 = vector.broadcast %cst_77 : f32 to vector<1x128xf32>
    %199 = arith.addf %197, %198 : vector<1x128xf32>
    %200 = math.tanh %192 : vector<1x128xf32>
    %201 = vector.extract_strided_slice %199 {offsets = [0, 0], sizes = [1, 32], strides = [1, 1]} : vector<1x128xf32> to vector<1x32xf32>
    %202 = vector.extract_strided_slice %199 {offsets = [0, 32], sizes = [1, 32], strides = [1, 1]} : vector<1x128xf32> to vector<1x32xf32>
    %203 = vector.extract_strided_slice %200 {offsets = [0, 64], sizes = [1, 32], strides = [1, 1]} : vector<1x128xf32> to vector<1x32xf32>
    %204 = vector.extract_strided_slice %199 {offsets = [0, 96], sizes = [1, 32], strides = [1, 1]} : vector<1x128xf32> to vector<1x32xf32>
    %205 = arith.mulf %202, %186 : vector<1x32xf32>
    %206 = arith.mulf %201, %203 : vector<1x32xf32>
    %207 = arith.addf %205, %206 : vector<1x32xf32>
    %208 = math.tanh %207 : vector<1x32xf32>
    %209 = arith.mulf %204, %208 : vector<1x32xf32>
    %c7_78 = arith.constant 7 : index
    %c0_79 = arith.constant 0 : index
    %210 = vector.load %arg14[%c7_78, %c0_79] : memref<16x32xf32, #tpu.memory_space<vmem>>, vector<1x32xf32>
    tpu.vector_store %arg14[%c7_78, %c0_79], %209 {strides = array<i32>} : memref<16x32xf32, #tpu.memory_space<vmem>>, vector<1x32xf32>,
    %c8 = arith.constant 8 : index
    %c0_80 = arith.constant 0 : index
    %211 = vector.load %arg13[%c8, %c0_80] : memref<16x128xf32, #tpu.memory_space<vmem>>, vector<1x128xf32>
    %cst_81 = arith.constant dense<0.000000e+00> : vector<1x128xf32>
    %212 = tpu.matmul %209, %40, %cst_81 {dimension_numbers = #tpu.dot_dimension_numbers<[1], [0], [0], [1], [0, 0, 1, 1], [], []>} : vector<1x32xf32>, vector<32x128xf32>, vector<1x128xf32> -> vector<1x128xf32>
    %213 = arith.addf %211, %212 : vector<1x128xf32>
    %cst_82 = arith.constant 5.000000e-01 : f32
    %214 = vector.broadcast %cst_82 : f32 to vector<1x128xf32>
    %215 = arith.mulf %214, %213 : vector<1x128xf32>
    %216 = math.tanh %215 : vector<1x128xf32>
    %cst_83 = arith.constant 5.000000e-01 : f32
    %217 = vector.broadcast %cst_83 : f32 to vector<1x128xf32>
    %218 = arith.mulf %217, %216 : vector<1x128xf32>
    %cst_84 = arith.constant 5.000000e-01 : f32
    %219 = vector.broadcast %cst_84 : f32 to vector<1x128xf32>
    %220 = arith.addf %218, %219 : vector<1x128xf32>
    %221 = math.tanh %213 : vector<1x128xf32>
    %222 = vector.extract_strided_slice %220 {offsets = [0, 0], sizes = [1, 32], strides = [1, 1]} : vector<1x128xf32> to vector<1x32xf32>
    %223 = vector.extract_strided_slice %220 {offsets = [0, 32], sizes = [1, 32], strides = [1, 1]} : vector<1x128xf32> to vector<1x32xf32>
    %224 = vector.extract_strided_slice %221 {offsets = [0, 64], sizes = [1, 32], strides = [1, 1]} : vector<1x128xf32> to vector<1x32xf32>
    %225 = vector.extract_strided_slice %220 {offsets = [0, 96], sizes = [1, 32], strides = [1, 1]} : vector<1x128xf32> to vector<1x32xf32>
    %226 = arith.mulf %223, %207 : vector<1x32xf32>
    %227 = arith.mulf %222, %224 : vector<1x32xf32>
    %228 = arith.addf %226, %227 : vector<1x32xf32>
    %229 = math.tanh %228 : vector<1x32xf32>
    %230 = arith.mulf %225, %229 : vector<1x32xf32>
    %c8_85 = arith.constant 8 : index
    %c0_86 = arith.constant 0 : index
    %231 = vector.load %arg14[%c8_85, %c0_86] : memref<16x32xf32, #tpu.memory_space<vmem>>, vector<1x32xf32>
    tpu.vector_store %arg14[%c8_85, %c0_86], %230 {strides = array<i32>} : memref<16x32xf32, #tpu.memory_space<vmem>>, vector<1x32xf32>,
    %c9 = arith.constant 9 : index
    %c0_87 = arith.constant 0 : index
    %232 = vector.load %arg13[%c9, %c0_87] : memref<16x128xf32, #tpu.memory_space<vmem>>, vector<1x128xf32>
    %cst_88 = arith.constant dense<0.000000e+00> : vector<1x128xf32>
    %233 = tpu.matmul %230, %40, %cst_88 {dimension_numbers = #tpu.dot_dimension_numbers<[1], [0], [0], [1], [0, 0, 1, 1], [], []>} : vector<1x32xf32>, vector<32x128xf32>, vector<1x128xf32> -> vector<1x128xf32>
    %234 = arith.addf %232, %233 : vector<1x128xf32>
    %cst_89 = arith.constant 5.000000e-01 : f32
    %235 = vector.broadcast %cst_89 : f32 to vector<1x128xf32>
    %236 = arith.mulf %235, %234 : vector<1x128xf32>
    %237 = math.tanh %236 : vector<1x128xf32>
    %cst_90 = arith.constant 5.000000e-01 : f32
    %238 = vector.broadcast %cst_90 : f32 to vector<1x128xf32>
    %239 = arith.mulf %238, %237 : vector<1x128xf32>
    %cst_91 = arith.constant 5.000000e-01 : f32
    %240 = vector.broadcast %cst_91 : f32 to vector<1x128xf32>
    %241 = arith.addf %239, %240 : vector<1x128xf32>
    %242 = math.tanh %234 : vector<1x128xf32>
    %243 = vector.extract_strided_slice %241 {offsets = [0, 0], sizes = [1, 32], strides = [1, 1]} : vector<1x128xf32> to vector<1x32xf32>
    %244 = vector.extract_strided_slice %241 {offsets = [0, 32], sizes = [1, 32], strides = [1, 1]} : vector<1x128xf32> to vector<1x32xf32>
    %245 = vector.extract_strided_slice %242 {offsets = [0, 64], sizes = [1, 32], strides = [1, 1]} : vector<1x128xf32> to vector<1x32xf32>
    %246 = vector.extract_strided_slice %241 {offsets = [0, 96], sizes = [1, 32], strides = [1, 1]} : vector<1x128xf32> to vector<1x32xf32>
    %247 = arith.mulf %244, %228 : vector<1x32xf32>
    %248 = arith.mulf %243, %245 : vector<1x32xf32>
    %249 = arith.addf %247, %248 : vector<1x32xf32>
    %250 = math.tanh %249 : vector<1x32xf32>
    %251 = arith.mulf %246, %250 : vector<1x32xf32>
    %c9_92 = arith.constant 9 : index
    %c0_93 = arith.constant 0 : index
    %252 = vector.load %arg14[%c9_92, %c0_93] : memref<16x32xf32, #tpu.memory_space<vmem>>, vector<1x32xf32>
    tpu.vector_store %arg14[%c9_92, %c0_93], %251 {strides = array<i32>} : memref<16x32xf32, #tpu.memory_space<vmem>>, vector<1x32xf32>,
    %c10 = arith.constant 10 : index
    %c0_94 = arith.constant 0 : index
    %253 = vector.load %arg13[%c10, %c0_94] : memref<16x128xf32, #tpu.memory_space<vmem>>, vector<1x128xf32>
    %cst_95 = arith.constant dense<0.000000e+00> : vector<1x128xf32>
    %254 = tpu.matmul %251, %40, %cst_95 {dimension_numbers = #tpu.dot_dimension_numbers<[1], [0], [0], [1], [0, 0, 1, 1], [], []>} : vector<1x32xf32>, vector<32x128xf32>, vector<1x128xf32> -> vector<1x128xf32>
    %255 = arith.addf %253, %254 : vector<1x128xf32>
    %cst_96 = arith.constant 5.000000e-01 : f32
    %256 = vector.broadcast %cst_96 : f32 to vector<1x128xf32>
    %257 = arith.mulf %256, %255 : vector<1x128xf32>
    %258 = math.tanh %257 : vector<1x128xf32>
    %cst_97 = arith.constant 5.000000e-01 : f32
    %259 = vector.broadcast %cst_97 : f32 to vector<1x128xf32>
    %260 = arith.mulf %259, %258 : vector<1x128xf32>
    %cst_98 = arith.constant 5.000000e-01 : f32
    %261 = vector.broadcast %cst_98 : f32 to vector<1x128xf32>
    %262 = arith.addf %260, %261 : vector<1x128xf32>
    %263 = math.tanh %255 : vector<1x128xf32>
    %264 = vector.extract_strided_slice %262 {offsets = [0, 0], sizes = [1, 32], strides = [1, 1]} : vector<1x128xf32> to vector<1x32xf32>
    %265 = vector.extract_strided_slice %262 {offsets = [0, 32], sizes = [1, 32], strides = [1, 1]} : vector<1x128xf32> to vector<1x32xf32>
    %266 = vector.extract_strided_slice %263 {offsets = [0, 64], sizes = [1, 32], strides = [1, 1]} : vector<1x128xf32> to vector<1x32xf32>
    %267 = vector.extract_strided_slice %262 {offsets = [0, 96], sizes = [1, 32], strides = [1, 1]} : vector<1x128xf32> to vector<1x32xf32>
    %268 = arith.mulf %265, %249 : vector<1x32xf32>
    %269 = arith.mulf %264, %266 : vector<1x32xf32>
    %270 = arith.addf %268, %269 : vector<1x32xf32>
    %271 = math.tanh %270 : vector<1x32xf32>
    %272 = arith.mulf %267, %271 : vector<1x32xf32>
    %c10_99 = arith.constant 10 : index
    %c0_100 = arith.constant 0 : index
    %273 = vector.load %arg14[%c10_99, %c0_100] : memref<16x32xf32, #tpu.memory_space<vmem>>, vector<1x32xf32>
    tpu.vector_store %arg14[%c10_99, %c0_100], %272 {strides = array<i32>} : memref<16x32xf32, #tpu.memory_space<vmem>>, vector<1x32xf32>,
    %c11 = arith.constant 11 : index
    %c0_101 = arith.constant 0 : index
    %274 = vector.load %arg13[%c11, %c0_101] : memref<16x128xf32, #tpu.memory_space<vmem>>, vector<1x128xf32>
    %cst_102 = arith.constant dense<0.000000e+00> : vector<1x128xf32>
    %275 = tpu.matmul %272, %40, %cst_102 {dimension_numbers = #tpu.dot_dimension_numbers<[1], [0], [0], [1], [0, 0, 1, 1], [], []>} : vector<1x32xf32>, vector<32x128xf32>, vector<1x128xf32> -> vector<1x128xf32>
    %276 = arith.addf %274, %275 : vector<1x128xf32>
    %cst_103 = arith.constant 5.000000e-01 : f32
    %277 = vector.broadcast %cst_103 : f32 to vector<1x128xf32>
    %278 = arith.mulf %277, %276 : vector<1x128xf32>
    %279 = math.tanh %278 : vector<1x128xf32>
    %cst_104 = arith.constant 5.000000e-01 : f32
    %280 = vector.broadcast %cst_104 : f32 to vector<1x128xf32>
    %281 = arith.mulf %280, %279 : vector<1x128xf32>
    %cst_105 = arith.constant 5.000000e-01 : f32
    %282 = vector.broadcast %cst_105 : f32 to vector<1x128xf32>
    %283 = arith.addf %281, %282 : vector<1x128xf32>
    %284 = math.tanh %276 : vector<1x128xf32>
    %285 = vector.extract_strided_slice %283 {offsets = [0, 0], sizes = [1, 32], strides = [1, 1]} : vector<1x128xf32> to vector<1x32xf32>
    %286 = vector.extract_strided_slice %283 {offsets = [0, 32], sizes = [1, 32], strides = [1, 1]} : vector<1x128xf32> to vector<1x32xf32>
    %287 = vector.extract_strided_slice %284 {offsets = [0, 64], sizes = [1, 32], strides = [1, 1]} : vector<1x128xf32> to vector<1x32xf32>
    %288 = vector.extract_strided_slice %283 {offsets = [0, 96], sizes = [1, 32], strides = [1, 1]} : vector<1x128xf32> to vector<1x32xf32>
    %289 = arith.mulf %286, %270 : vector<1x32xf32>
    %290 = arith.mulf %285, %287 : vector<1x32xf32>
    %291 = arith.addf %289, %290 : vector<1x32xf32>
    %292 = math.tanh %291 : vector<1x32xf32>
    %293 = arith.mulf %288, %292 : vector<1x32xf32>
    %c11_106 = arith.constant 11 : index
    %c0_107 = arith.constant 0 : index
    %294 = vector.load %arg14[%c11_106, %c0_107] : memref<16x32xf32, #tpu.memory_space<vmem>>, vector<1x32xf32>
    tpu.vector_store %arg14[%c11_106, %c0_107], %293 {strides = array<i32>} : memref<16x32xf32, #tpu.memory_space<vmem>>, vector<1x32xf32>,
    %c12 = arith.constant 12 : index
    %c0_108 = arith.constant 0 : index
    %295 = vector.load %arg13[%c12, %c0_108] : memref<16x128xf32, #tpu.memory_space<vmem>>, vector<1x128xf32>
    %cst_109 = arith.constant dense<0.000000e+00> : vector<1x128xf32>
    %296 = tpu.matmul %293, %40, %cst_109 {dimension_numbers = #tpu.dot_dimension_numbers<[1], [0], [0], [1], [0, 0, 1, 1], [], []>} : vector<1x32xf32>, vector<32x128xf32>, vector<1x128xf32> -> vector<1x128xf32>
    %297 = arith.addf %295, %296 : vector<1x128xf32>
    %cst_110 = arith.constant 5.000000e-01 : f32
    %298 = vector.broadcast %cst_110 : f32 to vector<1x128xf32>
    %299 = arith.mulf %298, %297 : vector<1x128xf32>
    %300 = math.tanh %299 : vector<1x128xf32>
    %cst_111 = arith.constant 5.000000e-01 : f32
    %301 = vector.broadcast %cst_111 : f32 to vector<1x128xf32>
    %302 = arith.mulf %301, %300 : vector<1x128xf32>
    %cst_112 = arith.constant 5.000000e-01 : f32
    %303 = vector.broadcast %cst_112 : f32 to vector<1x128xf32>
    %304 = arith.addf %302, %303 : vector<1x128xf32>
    %305 = math.tanh %297 : vector<1x128xf32>
    %306 = vector.extract_strided_slice %304 {offsets = [0, 0], sizes = [1, 32], strides = [1, 1]} : vector<1x128xf32> to vector<1x32xf32>
    %307 = vector.extract_strided_slice %304 {offsets = [0, 32], sizes = [1, 32], strides = [1, 1]} : vector<1x128xf32> to vector<1x32xf32>
    %308 = vector.extract_strided_slice %305 {offsets = [0, 64], sizes = [1, 32], strides = [1, 1]} : vector<1x128xf32> to vector<1x32xf32>
    %309 = vector.extract_strided_slice %304 {offsets = [0, 96], sizes = [1, 32], strides = [1, 1]} : vector<1x128xf32> to vector<1x32xf32>
    %310 = arith.mulf %307, %291 : vector<1x32xf32>
    %311 = arith.mulf %306, %308 : vector<1x32xf32>
    %312 = arith.addf %310, %311 : vector<1x32xf32>
    %313 = math.tanh %312 : vector<1x32xf32>
    %314 = arith.mulf %309, %313 : vector<1x32xf32>
    %c12_113 = arith.constant 12 : index
    %c0_114 = arith.constant 0 : index
    %315 = vector.load %arg14[%c12_113, %c0_114] : memref<16x32xf32, #tpu.memory_space<vmem>>, vector<1x32xf32>
    tpu.vector_store %arg14[%c12_113, %c0_114], %314 {strides = array<i32>} : memref<16x32xf32, #tpu.memory_space<vmem>>, vector<1x32xf32>,
    %c13 = arith.constant 13 : index
    %c0_115 = arith.constant 0 : index
    %316 = vector.load %arg13[%c13, %c0_115] : memref<16x128xf32, #tpu.memory_space<vmem>>, vector<1x128xf32>
    %cst_116 = arith.constant dense<0.000000e+00> : vector<1x128xf32>
    %317 = tpu.matmul %314, %40, %cst_116 {dimension_numbers = #tpu.dot_dimension_numbers<[1], [0], [0], [1], [0, 0, 1, 1], [], []>} : vector<1x32xf32>, vector<32x128xf32>, vector<1x128xf32> -> vector<1x128xf32>
    %318 = arith.addf %316, %317 : vector<1x128xf32>
    %cst_117 = arith.constant 5.000000e-01 : f32
    %319 = vector.broadcast %cst_117 : f32 to vector<1x128xf32>
    %320 = arith.mulf %319, %318 : vector<1x128xf32>
    %321 = math.tanh %320 : vector<1x128xf32>
    %cst_118 = arith.constant 5.000000e-01 : f32
    %322 = vector.broadcast %cst_118 : f32 to vector<1x128xf32>
    %323 = arith.mulf %322, %321 : vector<1x128xf32>
    %cst_119 = arith.constant 5.000000e-01 : f32
    %324 = vector.broadcast %cst_119 : f32 to vector<1x128xf32>
    %325 = arith.addf %323, %324 : vector<1x128xf32>
    %326 = math.tanh %318 : vector<1x128xf32>
    %327 = vector.extract_strided_slice %325 {offsets = [0, 0], sizes = [1, 32], strides = [1, 1]} : vector<1x128xf32> to vector<1x32xf32>
    %328 = vector.extract_strided_slice %325 {offsets = [0, 32], sizes = [1, 32], strides = [1, 1]} : vector<1x128xf32> to vector<1x32xf32>
    %329 = vector.extract_strided_slice %326 {offsets = [0, 64], sizes = [1, 32], strides = [1, 1]} : vector<1x128xf32> to vector<1x32xf32>
    %330 = vector.extract_strided_slice %325 {offsets = [0, 96], sizes = [1, 32], strides = [1, 1]} : vector<1x128xf32> to vector<1x32xf32>
    %331 = arith.mulf %328, %312 : vector<1x32xf32>
    %332 = arith.mulf %327, %329 : vector<1x32xf32>
    %333 = arith.addf %331, %332 : vector<1x32xf32>
    %334 = math.tanh %333 : vector<1x32xf32>
    %335 = arith.mulf %330, %334 : vector<1x32xf32>
    %c13_120 = arith.constant 13 : index
    %c0_121 = arith.constant 0 : index
    %336 = vector.load %arg14[%c13_120, %c0_121] : memref<16x32xf32, #tpu.memory_space<vmem>>, vector<1x32xf32>
    tpu.vector_store %arg14[%c13_120, %c0_121], %335 {strides = array<i32>} : memref<16x32xf32, #tpu.memory_space<vmem>>, vector<1x32xf32>,
    %c14 = arith.constant 14 : index
    %c0_122 = arith.constant 0 : index
    %337 = vector.load %arg13[%c14, %c0_122] : memref<16x128xf32, #tpu.memory_space<vmem>>, vector<1x128xf32>
    %cst_123 = arith.constant dense<0.000000e+00> : vector<1x128xf32>
    %338 = tpu.matmul %335, %40, %cst_123 {dimension_numbers = #tpu.dot_dimension_numbers<[1], [0], [0], [1], [0, 0, 1, 1], [], []>} : vector<1x32xf32>, vector<32x128xf32>, vector<1x128xf32> -> vector<1x128xf32>
    %339 = arith.addf %337, %338 : vector<1x128xf32>
    %cst_124 = arith.constant 5.000000e-01 : f32
    %340 = vector.broadcast %cst_124 : f32 to vector<1x128xf32>
    %341 = arith.mulf %340, %339 : vector<1x128xf32>
    %342 = math.tanh %341 : vector<1x128xf32>
    %cst_125 = arith.constant 5.000000e-01 : f32
    %343 = vector.broadcast %cst_125 : f32 to vector<1x128xf32>
    %344 = arith.mulf %343, %342 : vector<1x128xf32>
    %cst_126 = arith.constant 5.000000e-01 : f32
    %345 = vector.broadcast %cst_126 : f32 to vector<1x128xf32>
    %346 = arith.addf %344, %345 : vector<1x128xf32>
    %347 = math.tanh %339 : vector<1x128xf32>
    %348 = vector.extract_strided_slice %346 {offsets = [0, 0], sizes = [1, 32], strides = [1, 1]} : vector<1x128xf32> to vector<1x32xf32>
    %349 = vector.extract_strided_slice %346 {offsets = [0, 32], sizes = [1, 32], strides = [1, 1]} : vector<1x128xf32> to vector<1x32xf32>
    %350 = vector.extract_strided_slice %347 {offsets = [0, 64], sizes = [1, 32], strides = [1, 1]} : vector<1x128xf32> to vector<1x32xf32>
    %351 = vector.extract_strided_slice %346 {offsets = [0, 96], sizes = [1, 32], strides = [1, 1]} : vector<1x128xf32> to vector<1x32xf32>
    %352 = arith.mulf %349, %333 : vector<1x32xf32>
    %353 = arith.mulf %348, %350 : vector<1x32xf32>
    %354 = arith.addf %352, %353 : vector<1x32xf32>
    %355 = math.tanh %354 : vector<1x32xf32>
    %356 = arith.mulf %351, %355 : vector<1x32xf32>
    %c14_127 = arith.constant 14 : index
    %c0_128 = arith.constant 0 : index
    %357 = vector.load %arg14[%c14_127, %c0_128] : memref<16x32xf32, #tpu.memory_space<vmem>>, vector<1x32xf32>
    tpu.vector_store %arg14[%c14_127, %c0_128], %356 {strides = array<i32>} : memref<16x32xf32, #tpu.memory_space<vmem>>, vector<1x32xf32>,
    %c15 = arith.constant 15 : index
    %c0_129 = arith.constant 0 : index
    %358 = vector.load %arg13[%c15, %c0_129] : memref<16x128xf32, #tpu.memory_space<vmem>>, vector<1x128xf32>
    %cst_130 = arith.constant dense<0.000000e+00> : vector<1x128xf32>
    %359 = tpu.matmul %356, %40, %cst_130 {dimension_numbers = #tpu.dot_dimension_numbers<[1], [0], [0], [1], [0, 0, 1, 1], [], []>} : vector<1x32xf32>, vector<32x128xf32>, vector<1x128xf32> -> vector<1x128xf32>
    %360 = arith.addf %358, %359 : vector<1x128xf32>
    %cst_131 = arith.constant 5.000000e-01 : f32
    %361 = vector.broadcast %cst_131 : f32 to vector<1x128xf32>
    %362 = arith.mulf %361, %360 : vector<1x128xf32>
    %363 = math.tanh %362 : vector<1x128xf32>
    %cst_132 = arith.constant 5.000000e-01 : f32
    %364 = vector.broadcast %cst_132 : f32 to vector<1x128xf32>
    %365 = arith.mulf %364, %363 : vector<1x128xf32>
    %cst_133 = arith.constant 5.000000e-01 : f32
    %366 = vector.broadcast %cst_133 : f32 to vector<1x128xf32>
    %367 = arith.addf %365, %366 : vector<1x128xf32>
    %368 = math.tanh %360 : vector<1x128xf32>
    %369 = vector.extract_strided_slice %367 {offsets = [0, 0], sizes = [1, 32], strides = [1, 1]} : vector<1x128xf32> to vector<1x32xf32>
    %370 = vector.extract_strided_slice %367 {offsets = [0, 32], sizes = [1, 32], strides = [1, 1]} : vector<1x128xf32> to vector<1x32xf32>
    %371 = vector.extract_strided_slice %368 {offsets = [0, 64], sizes = [1, 32], strides = [1, 1]} : vector<1x128xf32> to vector<1x32xf32>
    %372 = vector.extract_strided_slice %367 {offsets = [0, 96], sizes = [1, 32], strides = [1, 1]} : vector<1x128xf32> to vector<1x32xf32>
    %373 = arith.mulf %370, %354 : vector<1x32xf32>
    %374 = arith.mulf %369, %371 : vector<1x32xf32>
    %375 = arith.addf %373, %374 : vector<1x32xf32>
    %376 = math.tanh %375 : vector<1x32xf32>
    %377 = arith.mulf %372, %376 : vector<1x32xf32>
    %c15_134 = arith.constant 15 : index
    %c0_135 = arith.constant 0 : index
    %378 = vector.load %arg14[%c15_134, %c0_135] : memref<16x32xf32, #tpu.memory_space<vmem>>, vector<1x32xf32>
    tpu.vector_store %arg14[%c15_134, %c0_135], %377 {strides = array<i32>} : memref<16x32xf32, #tpu.memory_space<vmem>>, vector<1x32xf32>,
    %c0_136 = arith.constant 0 : index
    %c0_137 = arith.constant 0 : index
    %379 = vector.load %arg14[%c0_136, %c0_137] : memref<16x32xf32, #tpu.memory_space<vmem>>, vector<16x32xf32>
    %c0_138 = arith.constant 0 : index
    %c0_139 = arith.constant 0 : index
    %380 = vector.load %arg8[%c0_138, %c0_139] : memref<1x32xf32, #tpu.memory_space<vmem>>, vector<1x32xf32>
    %c0_140 = arith.constant 0 : index
    %c0_141 = arith.constant 0 : index
    %381 = vector.load %arg9[%c0_140, %c0_141] : memref<1x32xf32, #tpu.memory_space<vmem>>, vector<1x32xf32>
    %cst_142 = arith.constant dense<0.000000e+00> : vector<32xf32>
    %382 = vector.multi_reduction <add>, %379, %cst_142 [0] : vector<16x32xf32> to vector<32xf32>
    %383 = vector.shape_cast %382 : vector<32xf32> to vector<1x32xf32>
    %cst_143 = arith.constant 1.600000e+01 : f32
    %384 = vector.broadcast %cst_143 : f32 to vector<1x32xf32>
    %385 = arith.divf %383, %384 : vector<1x32xf32>
    %386 = vector.broadcast %385 : vector<1x32xf32> to vector<16x32xf32>
    %387 = arith.subf %379, %386 : vector<16x32xf32>
    %388 = arith.mulf %387, %387 : vector<16x32xf32>
    %cst_144 = arith.constant dense<0.000000e+00> : vector<32xf32>
    %389 = vector.multi_reduction <add>, %388, %cst_144 [0] : vector<16x32xf32> to vector<32xf32>
    %390 = vector.shape_cast %389 : vector<32xf32> to vector<1x32xf32>
    %cst_145 = arith.constant 1.600000e+01 : f32
    %391 = vector.broadcast %cst_145 : f32 to vector<1x32xf32>
    %392 = arith.divf %390, %391 : vector<1x32xf32>
    %393 = vector.broadcast %385 : vector<1x32xf32> to vector<16x32xf32>
    %394 = arith.subf %379, %393 : vector<16x32xf32>
    %cst_146 = arith.constant 9.99999974E-6 : f32
    %395 = vector.broadcast %cst_146 : f32 to vector<1x32xf32>
    %396 = arith.addf %392, %395 : vector<1x32xf32>
    %397 = math.rsqrt %396 : vector<1x32xf32>
    %398 = vector.broadcast %397 : vector<1x32xf32> to vector<16x32xf32>
    %399 = arith.mulf %394, %398 : vector<16x32xf32>
    %400 = vector.broadcast %380 : vector<1x32xf32> to vector<16x32xf32>
    %401 = arith.mulf %399, %400 : vector<16x32xf32>
    %402 = vector.broadcast %381 : vector<1x32xf32> to vector<16x32xf32>
    %403 = arith.addf %401, %402 : vector<16x32xf32>
    %c0_147 = arith.constant 0 : index
    %c0_148 = arith.constant 0 : index
    %404 = vector.load %arg10[%c0_147, %c0_148] : memref<1x32xf32, #tpu.memory_space<vmem>>, vector<1x32xf32>
    %405 = vector.broadcast %404 : vector<1x32xf32> to vector<16x32xf32>
    %406 = arith.mulf %403, %405 : vector<16x32xf32>
    %cst_149 = arith.constant dense<0.000000e+00> : vector<16xf32>
    %407 = vector.multi_reduction <add>, %406, %cst_149 [1] : vector<16x32xf32> to vector<16xf32>
    %408 = vector.shape_cast %407 : vector<16xf32> to vector<16x1xf32>
    %c0_150 = arith.constant 0 : index
    %c0_151 = arith.constant 0 : index
    %409 = vector.load %arg11[%c0_150, %c0_151] : memref<1x1xf32, #tpu.memory_space<vmem>>, vector<1x1xf32>
    %410 = vector.broadcast %409 : vector<1x1xf32> to vector<16x1xf32>
    %411 = arith.addf %408, %410 : vector<16x1xf32>
    %c0_152 = arith.constant 0 : index
    %c0_153 = arith.constant 0 : index
    %412 = vector.load %arg12[%c0_152, %c0_153] : memref<16x1xf32, #tpu.memory_space<vmem>>, vector<16x1xf32>
    tpu.vector_store %arg12[%c0_152, %c0_153], %411 {strides = array<i32>} : memref<16x1xf32, #tpu.memory_space<vmem>>, vector<16x1xf32>,
    return
  }
}

</mosaic_0001>

<llo_original>
// kernel: tpu_custom_call.1
$region0: #{tpu_custom_call.1}
  #allocation0 [shape = 'u32[]', space=smem, size = 0x4, offset = 0x4, fixed_abs, tag = 'smem constant byte address 0x4 - core index']
  #allocation1 [shape = 'u32[144,128]{1,0:T(1,128)}', space=vmem, size = 0x12000, scoped, tag = 'internal scratch']
  #allocation2 [shape = 'f32[16,128]{1,0:T(8,128)}', space=vmem, size = 0x2000, scoped, tag = 'scratch operand']
  #allocation3 [shape = 'f32[16,32]{1,0:T(8,128)}', space=vmem, size = 0x2000, scoped, tag = 'scratch operand']
  #allocation4 [shape = 'f32[1,1]{1,0:T(1,128)S(1)}', space=vmem, size = 0x200, scoped, tag = 'scoped memory for tpu_custom_call.1']
  %s0 = inlined_call_operand.vmem [shape: f32[16,8], index: 0, kind: input, shape index: {}]
  %s1 = inlined_call_operand.vmem [shape: f32[1,8], index: 1, kind: input, shape index: {}]
  %s2 = inlined_call_operand.vmem [shape: f32[1,8], index: 2, kind: input, shape index: {}]
  %s3 = inlined_call_operand.vmem [shape: f32[1,8], index: 3, kind: input, shape index: {}]
  %s4 = inlined_call_operand.vmem [shape: f32[1,8], index: 4, kind: input, shape index: {}]
  %s5 = inlined_call_operand.hbm [shape: f32[8,128], index: 5, kind: input, shape index: {}]
  %s6 = inlined_call_operand.vmem [shape: f32[32,128], index: 6, kind: input, shape index: {}]
  %s7 = inlined_call_operand.vmem [shape: f32[1,128], index: 7, kind: input, shape index: {}]
  %s8 = inlined_call_operand.vmem [shape: f32[1,32], index: 8, kind: input, shape index: {}]
  %s9 = inlined_call_operand.vmem [shape: f32[1,32], index: 9, kind: input, shape index: {}]
  %s10 = inlined_call_operand.vmem [shape: f32[1,32], index: 10, kind: input, shape index: {}]
  %s11 = inlined_call_operand.<no memory space> [shape: f32[1,1], index: 11, kind: input, shape index: {}]
  %s12 = inlined_call_operand.vmem [shape: f32[16,1], index: 12, kind: output, shape index: {}]
  %s13 = sld [smem:[#allocation0]]
  $region62: #{tpu_custom_call.1} parent=0
    _
  %s15 = ssub.s32 1, %s13
  %s16 = scalar_select 0, %s15, %s13
  %v17 = vstv %s11
  %18 = vst [vmem:[#allocation4] sm:$0x1] %v17
  $region1: #{tpu_custom_call.1} parent=0
    #allocation5 [shape = 'u8[4096]{0}', space=vmem, size = 0x1000, scoped, tag = 'input window, operand 5, single buffered']
    #allocation6 [shape = 's32[1]{0}', space=sflag, size = 0x4, scoped, tag = 'scoped memory for tpu_custom_call.1']
    %19 = vsyncpa [#allocation6], 0
    // Predicated region
    $region2: #{tpu_custom_call.1} parent=1 // pred_check
      _
    $region3: #{tpu_custom_call.1} parent=1 // pred_check_branch
      %21 = sbr.rel (0) target = $region5
    $region4: #{tpu_custom_call.1} parent=1 // pred_region
      _
    $region5: #{tpu_custom_call.1} parent=1 // pred_fallthru
      _
    // Predicated region
    $region6: #{tpu_custom_call.1} parent=1 // pred_check
      _
    $region7: #{tpu_custom_call.1} parent=1 // pred_check_branch
      %23 = sbr.rel (0) target = $region9
    $region8: #{tpu_custom_call.1} parent=1 // pred_region
      _
    $region9: #{tpu_custom_call.1} parent=1 // pred_fallthru
      _
    // Predicated region
    $region10: #{tpu_custom_call.1} parent=1 // pred_check
      _
    $region11: #{tpu_custom_call.1} parent=1 // pred_check_branch
      %25 = sbr.rel (0) target = $region13
    $region12: #{tpu_custom_call.1} parent=1 // pred_region
      _
    $region13: #{tpu_custom_call.1} parent=1 // pred_fallthru
      _
    // Predicated region
    $region14: #{tpu_custom_call.1} parent=1 // pred_check
      _
    $region15: #{tpu_custom_call.1} parent=1 // pred_check_branch
      %27 = sbr.rel (0) target = $region17
    $region16: #{tpu_custom_call.1} parent=1 // pred_region
      _
    $region17: #{tpu_custom_call.1} parent=1 // pred_fallthru
      _
    // Predicated region
    $region18: #{tpu_custom_call.1} parent=1 // pred_check
      _
    $region19: #{tpu_custom_call.1} parent=1 // pred_check_branch
      %29 = sbr.rel (0) target = $region21
    $region20: #{tpu_custom_call.1} parent=1 // pred_region
      _
    $region21: #{tpu_custom_call.1} parent=1 // pred_fallthru
      _
    // Predicated region
    $region22: #{tpu_custom_call.1} parent=1 // pred_check
      _
    $region23: #{tpu_custom_call.1} parent=1 // pred_check_branch
      %31 = sbr.rel (0) target = $region25
    $region24: #{tpu_custom_call.1} parent=1 // pred_region
      %s33 = ssub.s32 128, 128
      %34 = vsyncadd [#allocation6], %s33
      %s36 = sshll.u32 [#allocation5], 4
      %s37 = int_to_ptr.vmem [resolvable:$true] %s36
      %39 = dma.hbm_to_vmem [thread:$0]  %s5, 128, %s37, [#allocation6]
    $region25: #{tpu_custom_call.1} parent=1 // pred_fallthru
      _
    // Predicated region
    $region26: #{tpu_custom_call.1} parent=1 // pred_check
      _
    $region27: #{tpu_custom_call.1} parent=1 // pred_check_branch
      %41 = sbr.rel (0) target = $region29
    $region28: #{tpu_custom_call.1} parent=1 // pred_region
      _
    $region29: #{tpu_custom_call.1} parent=1 // pred_fallthru
      _
    // Predicated region
    $region30: #{tpu_custom_call.1} parent=1 // pred_check
      _
    $region31: #{tpu_custom_call.1} parent=1 // pred_check_branch
      %43 = sbr.rel (0) target = $region33
    $region32: #{tpu_custom_call.1} parent=1 // pred_region
      _
    $region33: #{tpu_custom_call.1} parent=1 // pred_fallthru
      _
    // Predicated region
    $region34: #{tpu_custom_call.1} parent=1 // pred_check
      _
    $region35: #{tpu_custom_call.1} parent=1 // pred_check_branch
      %45 = sbr.rel (0) target = $region37
    $region36: #{tpu_custom_call.1} parent=1 // pred_region
      _
    $region37: #{tpu_custom_call.1} parent=1 // pred_fallthru
      _
    // Predicated region
    $region38: #{tpu_custom_call.1} parent=1 // pred_check
      _
    $region39: #{tpu_custom_call.1} parent=1 // pred_check_branch
      %47 = sbr.rel (0) target = $region41
    $region40: #{tpu_custom_call.1} parent=1 // pred_region
      _
    $region41: #{tpu_custom_call.1} parent=1 // pred_fallthru
      _
    // Predicated region
    $region42: #{tpu_custom_call.1} parent=1 // pred_check
      _
    $region43: #{tpu_custom_call.1} parent=1 // pred_check_branch
      %49 = sbr.rel (0) target = $region45
    $region44: #{tpu_custom_call.1} parent=1 // pred_region
      _
    $region45: #{tpu_custom_call.1} parent=1 // pred_fallthru
      _
    // Predicated region
    $region46: #{tpu_custom_call.1} parent=1 // pred_check
      _
    $region47: #{tpu_custom_call.1} parent=1 // pred_check_branch
      %51 = sbr.rel (0) target = $region49
    $region48: #{tpu_custom_call.1} parent=1 // pred_region
      _
    $region49: #{tpu_custom_call.1} parent=1 // pred_fallthru
      _
    // Predicated region
    $region50: #{tpu_custom_call.1} parent=1 // pred_check
      _
    $region51: #{tpu_custom_call.1} parent=1 // pred_check_branch
      %53 = sbr.rel (0) target = $region53
    $region52: #{tpu_custom_call.1} parent=1 // pred_region
      %54 = dma.done [#allocation6], 128
    $region53: #{tpu_custom_call.1} parent=1 // pred_fallthru
      _
    %v55 = vld [vmem:[%s0] sm:$0xff]
    %v56 = vld [vmem:[%s0 + $0x8] sm:$0xff]
    %vm57 = vcmask 64512
    %v58 = vsel %vm57, %v55, 0.0
    %v59 = vsel %vm57, %v56, 0.0
    %v60 = vadd.f32 %v58, %v59
    %v61 = vrot.slane %v60, 4
    %v62 = vadd.f32 %v60, %v61
    %v63 = vrot.slane %v62, 2
    %v64 = vadd.f32 %v62, %v63
    %v65 = vrot.slane %v64, 1
    %v66 = vadd.f32 %v64, %v65
    %v67 = vrcp.pop 16.0
    %v68 = vmul.f32 %v66, %v67
    %v69 = vsub.f32 %v55, %v68
    %v70 = vsub.f32 %v56, %v68
    %v71 = vmul.f32 %v69, %v69
    %v72 = vmul.f32 %v70, %v70
    %v73 = vsel %vm57, %v71, 0.0
    %v74 = vsel %vm57, %v72, 0.0
    %v75 = vadd.f32 %v73, %v74
    %v76 = vrot.slane %v75, 4
    %v77 = vadd.f32 %v75, %v76
    %v78 = vrot.slane %v77, 2
    %v79 = vadd.f32 %v77, %v78
    %v80 = vrot.slane %v79, 1
    %v81 = vadd.f32 %v79, %v80
    %v82 = vmul.f32 %v81, %v67
    %v83 = vadd.f32 %v82, 1e-05
    %v84 = vrsqrt.pop %v83
    %v85 = vld [vmem:[%s1] sm:$0x1]
    %v86 = vmul.f32 %v85, %v85
    %v87 = vmul.f32 %v86, %v82
    %v88 = vmul.f32 %v84, %v84
    %v89 = vmul.f32 %v87, %v88
    %v90 = vadd.f32 %v89, 1e-05
    %v91 = vrsqrt.pop %v90
    %v92 = vmul.f32 %v84, %v85
    %v93 = vmul.f32 %v92, %v91
    %v94 = vld [vmem:[%s3] sm:$0x1]
    %v95 = vmul.f32 %v93, %v94
    %v96 = vlaneseq
    %v97 = vshrl.u32 %v96, 7
    %v98 = vsub.s32 0, %v97
    %v99 = vrot.slane %v95, %v98
    %v100 = vmul.f32 %v69, %v99
    %v101 = vmul.f32 %v70, %v99
    %v102 = vld [vmem:[%s4] sm:$0x1]
    %v104 = vlaneseq
    %v105 = vshrl.u32 %v104, 7
    %v106 = vsub.s32 0, %v105
    %v107 = vrot.slane %v102, %v106
    %v109 = vadd.f32 %v100, %v107
    %v110 = vadd.f32 %v101, %v107
    %v111 = vld [vmem:[#allocation5] sm:$0xff]
    %v112 = vld [vmem:[%s7] sm:$0x1]
    %v114 = vlaneseq
    %v115 = vshrl.u32 %v114, 7
    %v116 = vsub.s32 0, %v115
    %v117 = vrot.slane %v112, %v116
    %v120 = vsel %vm57, %v109, 0
    %v123 = vsel %vm57, %v110, 0
    %125 = vmatprep.subr.mxu0 0.0
    %126 = vmatpush1.msra.mxu0 0.0
    %127 = vmatprep.subr.mxu0 0.0
    %128 = vmatpush1.msra.mxu0 0.0
    %129 = vmatprep.subr.mxu0 0.0
    %130 = vmatpush1.msra.mxu0 0.0
    %131 = vmatprep.subr.mxu0 0.0
    %132 = vmatpush1.msra.mxu0 0.0
    %133 = vmatprep.subr.mxu0 0.0
    %134 = vmatpush1.msra.mxu0 0.0
    %135 = vmatprep.subr.mxu0 0.0
    %136 = vmatpush1.msra.mxu0 0.0
    %137 = vmatprep.subr.mxu0 0.0
    %138 = vmatpush1.msra.mxu0 0.0
    %139 = vmatprep.subr.mxu0 0.0
    %140 = vmatpush1.msra.mxu0 0.0
    %141 = vmatprep.subr.mxu0 0.0
    %142 = vmatpush1.msra.mxu0 0.0
    %143 = vmatprep.subr.mxu0 0.0
    %144 = vmatpush1.msra.mxu0 0.0
    %145 = vmatprep.subr.mxu0 0.0
    %146 = vmatpush1.msra.mxu0 0.0
    %147 = vmatprep.subr.mxu0 0.0
    %148 = vmatpush1.msra.mxu0 0.0
    %149 = vmatprep.subr.mxu0 0.0
    %150 = vmatpush1.msra.mxu0 0.0
    %151 = vmatprep.subr.mxu0 0.0
    %152 = vmatpush1.msra.mxu0 0.0
    %153 = vmatprep.subr.mxu0 0.0
    %154 = vmatpush1.msra.mxu0 0.0
    %155 = vmatprep.subr.mxu0 0.0
    %156 = vmatpush1.msra.mxu0 %v111
    %157 = vmatprep.subr.mxu0 0.0
    %158 = vmatpush2.msra.mxu0 0.0
    %159 = vmatprep.subr.mxu0 0.0
    %160 = vmatpush2.msra.mxu0 0.0
    %161 = vmatprep.subr.mxu0 0.0
    %162 = vmatpush2.msra.mxu0 0.0
    %163 = vmatprep.subr.mxu0 0.0
    %164 = vmatpush2.msra.mxu0 0.0
    %165 = vmatprep.subr.mxu0 0.0
    %166 = vmatpush2.msra.mxu0 0.0
    %167 = vmatprep.subr.mxu0 0.0
    %168 = vmatpush2.msra.mxu0 0.0
    %169 = vmatprep.subr.mxu0 0.0
    %170 = vmatpush2.msra.mxu0 0.0
    %171 = vmatprep.subr.mxu0 0.0
    %172 = vmatpush2.msra.mxu0 0.0
    %173 = vmatprep.subr.mxu0 0.0
    %174 = vmatpush2.msra.mxu0 0.0
    %175 = vmatprep.subr.mxu0 0.0
    %176 = vmatpush2.msra.mxu0 0.0
    %177 = vmatprep.subr.mxu0 0.0
    %178 = vmatpush2.msra.mxu0 0.0
    %179 = vmatprep.subr.mxu0 0.0
    %180 = vmatpush2.msra.mxu0 0.0
    %181 = vmatprep.subr.mxu0 0.0
    %182 = vmatpush2.msra.mxu0 0.0
    %183 = vmatprep.subr.mxu0 0.0
    %184 = vmatpush2.msra.mxu0 0.0
    %185 = vmatprep.subr.mxu0 0.0
    %186 = vmatpush2.msra.mxu0 0.0
    %187 = vmatprep.subr.mxu0 0.0
    %188 = vmatpush2.msra.mxu0 0.0
    %189 = vmatprep.mubr.f32.mxu0 0.0
    %190 = vmatmul.mubr.f32.gmra.mxu0 %v120
    %v191 = vpop.f32.mrf.mxu0
    %v192 = vadd.f32 %v117, %v191
    %v193 = vpop.f32.mrf.mxu0
    %194 = vmatprep.mubr.f32.mxu0 0.0
    %195 = vmatmul.mubr.f32.gmra.mxu0 %v123
    %v196 = vpop.f32.mrf.mxu0
    %v197 = vadd.f32 %v117, %v196
    %v198 = vpop.f32.mrf.mxu0
    %199 = vdwg.mxu0
    %200 = vst [vmem:[#allocation2] sm:$0xff] %v192
    %201 = vst [vmem:[#allocation2 + $0x8] sm:$0xff] %v197
    %v202 = vld [vmem:[%s6] sm:$0xff]
    %v203 = vld [vmem:[%s6 + $0x8] sm:$0xff]
    %v204 = vld [vmem:[%s6 + $0x10] sm:$0xff]
    %v205 = vld [vmem:[%s6 + $0x18] sm:$0xff]
    %v206 = vld [vmem:[#allocation2] sm:$0x1]
    %vm207 = vcmask 261120
    %v209 = vsel %vm207, 0.0, 0
    %211 = vmatprep.subr.mxu0 0.0
    %212 = vmatpush1.msra.mxu0 0.0
    %213 = vmatprep.subr.mxu0 0.0
    %214 = vmatpush1.msra.mxu0 0.0
    %215 = vmatprep.subr.mxu0 0.0
    %216 = vmatpush1.msra.mxu0 0.0
    %217 = vmatprep.subr.mxu0 0.0
    %218 = vmatpush1.msra.mxu0 0.0
    %219 = vmatprep.subr.mxu0 0.0
    %220 = vmatpush1.msra.mxu0 0.0
    %221 = vmatprep.subr.mxu0 0.0
    %222 = vmatpush1.msra.mxu0 0.0
    %223 = vmatprep.subr.mxu0 0.0
    %224 = vmatpush1.msra.mxu0 0.0
    %225 = vmatprep.subr.mxu0 0.0
    %226 = vmatpush1.msra.mxu0 0.0
    %227 = vmatprep.subr.mxu0 0.0
    %228 = vmatpush1.msra.mxu0 0.0
    %229 = vmatprep.subr.mxu0 0.0
    %230 = vmatpush1.msra.mxu0 0.0
    %231 = vmatprep.subr.mxu0 0.0
    %232 = vmatpush1.msra.mxu0 0.0
    %233 = vmatprep.subr.mxu0 0.0
    %234 = vmatpush1.msra.mxu0 0.0
    %235 = vmatprep.subr.mxu0 0.0
    %236 = vmatpush1.msra.mxu0 %v205
    %237 = vmatprep.subr.mxu0 0.0
    %238 = vmatpush1.msra.mxu0 %v204
    %239 = vmatprep.subr.mxu0 0.0
    %240 = vmatpush1.msra.mxu0 %v203
    %241 = vmatprep.subr.mxu0 0.0
    %242 = vmatpush1.msra.mxu0 %v202
    %243 = vmatprep.subr.mxu0 0.0
    %244 = vmatpush2.msra.mxu0 0.0
    %245 = vmatprep.subr.mxu0 0.0
    %246 = vmatpush2.msra.mxu0 0.0
    %247 = vmatprep.subr.mxu0 0.0
    %248 = vmatpush2.msra.mxu0 0.0
    %249 = vmatprep.subr.mxu0 0.0
    %250 = vmatpush2.msra.mxu0 0.0
    %251 = vmatprep.subr.mxu0 0.0
    %252 = vmatpush2.msra.mxu0 0.0
    %253 = vmatprep.subr.mxu0 0.0
    %254 = vmatpush2.msra.mxu0 0.0
    %255 = vmatprep.subr.mxu0 0.0
    %256 = vmatpush2.msra.mxu0 0.0
    %257 = vmatprep.subr.mxu0 0.0
    %258 = vmatpush2.msra.mxu0 0.0
    %259 = vmatprep.subr.mxu0 0.0
    %260 = vmatpush2.msra.mxu0 0.0
    %261 = vmatprep.subr.mxu0 0.0
    %262 = vmatpush2.msra.mxu0 0.0
    %263 = vmatprep.subr.mxu0 0.0
    %264 = vmatpush2.msra.mxu0 0.0
    %265 = vmatprep.subr.mxu0 0.0
    %266 = vmatpush2.msra.mxu0 0.0
    %267 = vmatprep.subr.mxu0 0.0
    %268 = vmatpush2.msra.mxu0 0.0
    %269 = vmatprep.subr.mxu0 0.0
    %270 = vmatpush2.msra.mxu0 0.0
    %271 = vmatprep.subr.mxu0 0.0
    %272 = vmatpush2.msra.mxu0 0.0
    %273 = vmatprep.subr.mxu0 0.0
    %274 = vmatpush2.msra.mxu0 0.0
    %275 = vmatprep.mubr.f32.mxu0 0.0
    %276 = vmatmul.mubr.f32.gmra.mxu0 %v209
    %v277 = vpop.f32.mrf.mxu0
    %v278 = vadd.f32 0.0, %v277
    %v279 = vpop.f32.mrf.mxu0
    %280 = vdwg.mxu0
    %v281 = vadd.f32 %v206, %v278
    %v282 = vmul.f32 %v281, 0.5
    %v283 = vtanh.pop %v282
    %v284 = vmul.f32 %v283, 0.5
    %v285 = vadd.f32 %v284, 0.5
    %v286 = vtanh.pop %v281
    %v287 = vmul.f32 %v285, 0.0
    %289 = vrot.lane.b32.xlu0 %v286, 64
    %v290 = vpop.permute.xlu0 %289
    %v292 = vmul.f32 %v285, %v290
    %294 = vrot.lane.b32.xlu0 %v292, 32
    %v295 = vpop.permute.xlu0 %294
    %v297 = vadd.f32 %v287, %v295
    %v298 = vtanh.pop %v297
    %300 = vrot.lane.b32.xlu0 %v298, 64
    %v301 = vpop.permute.xlu0 %300
    %v303 = vmul.f32 %v285, %v301
    %305 = vrot.lane.b32.xlu0 %v303, 32
    %v306 = vpop.permute.xlu0 %305
    %vm308 = vcmask 253952
    %309 = vst.msk [vmem:[#allocation3] sm:$0x1] %vm308, %v306
    %v310 = vld [vmem:[#allocation2 + $0x1] sm:$0x1]
    %v311 = vsel %vm207, %v306, 0
    %313 = vmatprep.subr.mxu0 0.0
    %314 = vmatpush1.msra.mxu0 0.0
    %315 = vmatprep.subr.mxu0 0.0
    %316 = vmatpush1.msra.mxu0 0.0
    %317 = vmatprep.subr.mxu0 0.0
    %318 = vmatpush1.msra.mxu0 0.0
    %319 = vmatprep.subr.mxu0 0.0
    %320 = vmatpush1.msra.mxu0 0.0
    %321 = vmatprep.subr.mxu0 0.0
    %322 = vmatpush1.msra.mxu0 0.0
    %323 = vmatprep.subr.mxu0 0.0
    %324 = vmatpush1.msra.mxu0 0.0
    %325 = vmatprep.subr.mxu0 0.0
    %326 = vmatpush1.msra.mxu0 0.0
    %327 = vmatprep.subr.mxu0 0.0
    %328 = vmatpush1.msra.mxu0 0.0
    %329 = vmatprep.subr.mxu0 0.0
    %330 = vmatpush1.msra.mxu0 0.0
    %331 = vmatprep.subr.mxu0 0.0
    %332 = vmatpush1.msra.mxu0 0.0
    %333 = vmatprep.subr.mxu0 0.0
    %334 = vmatpush1.msra.mxu0 0.0
    %335 = vmatprep.subr.mxu0 0.0
    %336 = vmatpush1.msra.mxu0 0.0
    %337 = vmatprep.subr.mxu0 0.0
    %338 = vmatpush1.msra.mxu0 %v205
    %339 = vmatprep.subr.mxu0 0.0
    %340 = vmatpush1.msra.mxu0 %v204
    %341 = vmatprep.subr.mxu0 0.0
    %342 = vmatpush1.msra.mxu0 %v203
    %343 = vmatprep.subr.mxu0 0.0
    %344 = vmatpush1.msra.mxu0 %v202
    %345 = vmatprep.subr.mxu0 0.0
    %346 = vmatpush2.msra.mxu0 0.0
    %347 = vmatprep.subr.mxu0 0.0
    %348 = vmatpush2.msra.mxu0 0.0
    %349 = vmatprep.subr.mxu0 0.0
    %350 = vmatpush2.msra.mxu0 0.0
    %351 = vmatprep.subr.mxu0 0.0
    %352 = vmatpush2.msra.mxu0 0.0
    %353 = vmatprep.subr.mxu0 0.0
    %354 = vmatpush2.msra.mxu0 0.0
    %355 = vmatprep.subr.mxu0 0.0
    %356 = vmatpush2.msra.mxu0 0.0
    %357 = vmatprep.subr.mxu0 0.0
    %358 = vmatpush2.msra.mxu0 0.0
    %359 = vmatprep.subr.mxu0 0.0
    %360 = vmatpush2.msra.mxu0 0.0
    %361 = vmatprep.subr.mxu0 0.0
    %362 = vmatpush2.msra.mxu0 0.0
    %363 = vmatprep.subr.mxu0 0.0
    %364 = vmatpush2.msra.mxu0 0.0
    %365 = vmatprep.subr.mxu0 0.0
    %366 = vmatpush2.msra.mxu0 0.0
    %367 = vmatprep.subr.mxu0 0.0
    %368 = vmatpush2.msra.mxu0 0.0
    %369 = vmatprep.subr.mxu0 0.0
    %370 = vmatpush2.msra.mxu0 0.0
    %371 = vmatprep.subr.mxu0 0.0
    %372 = vmatpush2.msra.mxu0 0.0
    %373 = vmatprep.subr.mxu0 0.0
    %374 = vmatpush2.msra.mxu0 0.0
    %375 = vmatprep.subr.mxu0 0.0
    %376 = vmatpush2.msra.mxu0 0.0
    %377 = vmatprep.mubr.f32.mxu0 0.0
    %378 = vmatmul.mubr.f32.gmra.mxu0 %v311
    %v379 = vpop.f32.mrf.mxu0
    %v380 = vadd.f32 0.0, %v379
    %v381 = vpop.f32.mrf.mxu0
    %382 = vdwg.mxu0
    %v383 = vadd.f32 %v310, %v380
    %v384 = vmul.f32 %v383, 0.5
    %v385 = vtanh.pop %v384
    %v386 = vmul.f32 %v385, 0.5
    %v387 = vadd.f32 %v386, 0.5
    %v388 = vtanh.pop %v383
    %v389 = vmul.f32 %v387, %v297
    %391 = vrot.lane.b32.xlu0 %v388, 64
    %v392 = vpop.permute.xlu0 %391
    %v394 = vmul.f32 %v387, %v392
    %396 = vrot.lane.b32.xlu0 %v394, 32
    %v397 = vpop.permute.xlu0 %396
    %v399 = vadd.f32 %v389, %v397
    %v400 = vtanh.pop %v399
    %402 = vrot.lane.b32.xlu0 %v400, 64
    %v403 = vpop.permute.xlu0 %402
    %v405 = vmul.f32 %v387, %v403
    %407 = vrot.lane.b32.xlu0 %v405, 32
    %v408 = vpop.permute.xlu0 %407
    %410 = vst.msk [vmem:[#allocation3 + $0x1] sm:$0x1] %vm308, %v408
    %v411 = vld [vmem:[#allocation2 + $0x2] sm:$0x1]
    %v412 = vsel %vm207, %v408, 0
    %414 = vmatprep.subr.mxu0 0.0
    %415 = vmatpush1.msra.mxu0 0.0
    %416 = vmatprep.subr.mxu0 0.0
    %417 = vmatpush1.msra.mxu0 0.0
    %418 = vmatprep.subr.mxu0 0.0
    %419 = vmatpush1.msra.mxu0 0.0
    %420 = vmatprep.subr.mxu0 0.0
    %421 = vmatpush1.msra.mxu0 0.0
    %422 = vmatprep.subr.mxu0 0.0
    %423 = vmatpush1.msra.mxu0 0.0
    %424 = vmatprep.subr.mxu0 0.0
    %425 = vmatpush1.msra.mxu0 0.0
    %426 = vmatprep.subr.mxu0 0.0
    %427 = vmatpush1.msra.mxu0 0.0
    %428 = vmatprep.subr.mxu0 0.0
    %429 = vmatpush1.msra.mxu0 0.0
    %430 = vmatprep.subr.mxu0 0.0
    %431 = vmatpush1.msra.mxu0 0.0
    %432 = vmatprep.subr.mxu0 0.0
    %433 = vmatpush1.msra.mxu0 0.0
    %434 = vmatprep.subr.mxu0 0.0
    %435 = vmatpush1.msra.mxu0 0.0
    %436 = vmatprep.subr.mxu0 0.0
    %437 = vmatpush1.msra.mxu0 0.0
    %438 = vmatprep.subr.mxu0 0.0
    %439 = vmatpush1.msra.mxu0 %v205
    %440 = vmatprep.subr.mxu0 0.0
    %441 = vmatpush1.msra.mxu0 %v204
    %442 = vmatprep.subr.mxu0 0.0
    %443 = vmatpush1.msra.mxu0 %v203
    %444 = vmatprep.subr.mxu0 0.0
    %445 = vmatpush1.msra.mxu0 %v202
    %446 = vmatprep.subr.mxu0 0.0
    %447 = vmatpush2.msra.mxu0 0.0
    %448 = vmatprep.subr.mxu0 0.0
    %449 = vmatpush2.msra.mxu0 0.0
    %450 = vmatprep.subr.mxu0 0.0
    %451 = vmatpush2.msra.mxu0 0.0
    %452 = vmatprep.subr.mxu0 0.0
    %453 = vmatpush2.msra.mxu0 0.0
    %454 = vmatprep.subr.mxu0 0.0
    %455 = vmatpush2.msra.mxu0 0.0
    %456 = vmatprep.subr.mxu0 0.0
    %457 = vmatpush2.msra.mxu0 0.0
    %458 = vmatprep.subr.mxu0 0.0
    %459 = vmatpush2.msra.mxu0 0.0
    %460 = vmatprep.subr.mxu0 0.0
    %461 = vmatpush2.msra.mxu0 0.0
    %462 = vmatprep.subr.mxu0 0.0
    %463 = vmatpush2.msra.mxu0 0.0
    %464 = vmatprep.subr.mxu0 0.0
    %465 = vmatpush2.msra.mxu0 0.0
    %466 = vmatprep.subr.mxu0 0.0
    %467 = vmatpush2.msra.mxu0 0.0
    %468 = vmatprep.subr.mxu0 0.0
    %469 = vmatpush2.msra.mxu0 0.0
    %470 = vmatprep.subr.mxu0 0.0
    %471 = vmatpush2.msra.mxu0 0.0
    %472 = vmatprep.subr.mxu0 0.0
    %473 = vmatpush2.msra.mxu0 0.0
    %474 = vmatprep.subr.mxu0 0.0
    %475 = vmatpush2.msra.mxu0 0.0
    %476 = vmatprep.subr.mxu0 0.0
    %477 = vmatpush2.msra.mxu0 0.0
    %478 = vmatprep.mubr.f32.mxu0 0.0
    %479 = vmatmul.mubr.f32.gmra.mxu0 %v412
    %v480 = vpop.f32.mrf.mxu0
    %v481 = vadd.f32 0.0, %v480
    %v482 = vpop.f32.mrf.mxu0
    %483 = vdwg.mxu0
    %v484 = vadd.f32 %v411, %v481
    %v485 = vmul.f32 %v484, 0.5
    %v486 = vtanh.pop %v485
    %v487 = vmul.f32 %v486, 0.5
    %v488 = vadd.f32 %v487, 0.5
    %v489 = vtanh.pop %v484
    %v490 = vmul.f32 %v488, %v399
    %492 = vrot.lane.b32.xlu0 %v489, 64
    %v493 = vpop.permute.xlu0 %492
    %v495 = vmul.f32 %v488, %v493
    %497 = vrot.lane.b32.xlu0 %v495, 32
    %v498 = vpop.permute.xlu0 %497
    %v500 = vadd.f32 %v490, %v498
    %v501 = vtanh.pop %v500
    %503 = vrot.lane.b32.xlu0 %v501, 64
    %v504 = vpop.permute.xlu0 %503
    %v506 = vmul.f32 %v488, %v504
    %508 = vrot.lane.b32.xlu0 %v506, 32
    %v509 = vpop.permute.xlu0 %508
    %511 = vst.msk [vmem:[#allocation3 + $0x2] sm:$0x1] %vm308, %v509
    %v512 = vld [vmem:[#allocation2 + $0x3] sm:$0x1]
    %v513 = vsel %vm207, %v509, 0
    %515 = vmatprep.subr.mxu0 0.0
    %516 = vmatpush1.msra.mxu0 0.0
    %517 = vmatprep.subr.mxu0 0.0
    %518 = vmatpush1.msra.mxu0 0.0
    %519 = vmatprep.subr.mxu0 0.0
    %520 = vmatpush1.msra.mxu0 0.0
    %521 = vmatprep.subr.mxu0 0.0
    %522 = vmatpush1.msra.mxu0 0.0
    %523 = vmatprep.subr.mxu0 0.0
    %524 = vmatpush1.msra.mxu0 0.0
    %525 = vmatprep.subr.mxu0 0.0
    %526 = vmatpush1.msra.mxu0 0.0
    %527 = vmatprep.subr.mxu0 0.0
    %528 = vmatpush1.msra.mxu0 0.0
    %529 = vmatprep.subr.mxu0 0.0
    %530 = vmatpush1.msra.mxu0 0.0
    %531 = vmatprep.subr.mxu0 0.0
    %532 = vmatpush1.msra.mxu0 0.0
    %533 = vmatprep.subr.mxu0 0.0
    %534 = vmatpush1.msra.mxu0 0.0
    %535 = vmatprep.subr.mxu0 0.0
    %536 = vmatpush1.msra.mxu0 0.0
    %537 = vmatprep.subr.mxu0 0.0
    %538 = vmatpush1.msra.mxu0 0.0
    %539 = vmatprep.subr.mxu0 0.0
    %540 = vmatpush1.msra.mxu0 %v205
    %541 = vmatprep.subr.mxu0 0.0
    %542 = vmatpush1.msra.mxu0 %v204
    %543 = vmatprep.subr.mxu0 0.0
    %544 = vmatpush1.msra.mxu0 %v203
    %545 = vmatprep.subr.mxu0 0.0
    %546 = vmatpush1.msra.mxu0 %v202
    %547 = vmatprep.subr.mxu0 0.0
    %548 = vmatpush2.msra.mxu0 0.0
    %549 = vmatprep.subr.mxu0 0.0
    %550 = vmatpush2.msra.mxu0 0.0
    %551 = vmatprep.subr.mxu0 0.0
    %552 = vmatpush2.msra.mxu0 0.0
    %553 = vmatprep.subr.mxu0 0.0
    %554 = vmatpush2.msra.mxu0 0.0
    %555 = vmatprep.subr.mxu0 0.0
    %556 = vmatpush2.msra.mxu0 0.0
    %557 = vmatprep.subr.mxu0 0.0
    %558 = vmatpush2.msra.mxu0 0.0
    %559 = vmatprep.subr.mxu0 0.0
    %560 = vmatpush2.msra.mxu0 0.0
    %561 = vmatprep.subr.mxu0 0.0
    %562 = vmatpush2.msra.mxu0 0.0
    %563 = vmatprep.subr.mxu0 0.0
    %564 = vmatpush2.msra.mxu0 0.0
    %565 = vmatprep.subr.mxu0 0.0
    %566 = vmatpush2.msra.mxu0 0.0
    %567 = vmatprep.subr.mxu0 0.0
    %568 = vmatpush2.msra.mxu0 0.0
    %569 = vmatprep.subr.mxu0 0.0
    %570 = vmatpush2.msra.mxu0 0.0
    %571 = vmatprep.subr.mxu0 0.0
    %572 = vmatpush2.msra.mxu0 0.0
    %573 = vmatprep.subr.mxu0 0.0
    %574 = vmatpush2.msra.mxu0 0.0
    %575 = vmatprep.subr.mxu0 0.0
    %576 = vmatpush2.msra.mxu0 0.0
    %577 = vmatprep.subr.mxu0 0.0
    %578 = vmatpush2.msra.mxu0 0.0
    %579 = vmatprep.mubr.f32.mxu0 0.0
    %580 = vmatmul.mubr.f32.gmra.mxu0 %v513
    %v581 = vpop.f32.mrf.mxu0
    %v582 = vadd.f32 0.0, %v581
    %v583 = vpop.f32.mrf.mxu0
    %584 = vdwg.mxu0
    %v585 = vadd.f32 %v512, %v582
    %v586 = vmul.f32 %v585, 0.5
    %v587 = vtanh.pop %v586
    %v588 = vmul.f32 %v587, 0.5
    %v589 = vadd.f32 %v588, 0.5
    %v590 = vtanh.pop %v585
    %v591 = vmul.f32 %v589, %v500
    %593 = vrot.lane.b32.xlu0 %v590, 64
    %v594 = vpop.permute.xlu0 %593
    %v596 = vmul.f32 %v589, %v594
    %598 = vrot.lane.b32.xlu0 %v596, 32
    %v599 = vpop.permute.xlu0 %598
    %v601 = vadd.f32 %v591, %v599
    %v602 = vtanh.pop %v601
    %604 = vrot.lane.b32.xlu0 %v602, 64
    %v605 = vpop.permute.xlu0 %604
    %v607 = vmul.f32 %v589, %v605
    %609 = vrot.lane.b32.xlu0 %v607, 32
    %v610 = vpop.permute.xlu0 %609
    %612 = vst.msk [vmem:[#allocation3 + $0x3] sm:$0x1] %vm308, %v610
    %v613 = vld [vmem:[#allocation2 + $0x4] sm:$0x1]
    %v614 = vsel %vm207, %v610, 0
    %616 = vmatprep.subr.mxu0 0.0
    %617 = vmatpush1.msra.mxu0 0.0
    %618 = vmatprep.subr.mxu0 0.0
    %619 = vmatpush1.msra.mxu0 0.0
    %620 = vmatprep.subr.mxu0 0.0
    %621 = vmatpush1.msra.mxu0 0.0
    %622 = vmatprep.subr.mxu0 0.0
    %623 = vmatpush1.msra.mxu0 0.0
    %624 = vmatprep.subr.mxu0 0.0
    %625 = vmatpush1.msra.mxu0 0.0
    %626 = vmatprep.subr.mxu0 0.0
    %627 = vmatpush1.msra.mxu0 0.0
    %628 = vmatprep.subr.mxu0 0.0
    %629 = vmatpush1.msra.mxu0 0.0
    %630 = vmatprep.subr.mxu0 0.0
    %631 = vmatpush1.msra.mxu0 0.0
    %632 = vmatprep.subr.mxu0 0.0
    %633 = vmatpush1.msra.mxu0 0.0
    %634 = vmatprep.subr.mxu0 0.0
    %635 = vmatpush1.msra.mxu0 0.0
    %636 = vmatprep.subr.mxu0 0.0
    %637 = vmatpush1.msra.mxu0 0.0
    %638 = vmatprep.subr.mxu0 0.0
    %639 = vmatpush1.msra.mxu0 0.0
    %640 = vmatprep.subr.mxu0 0.0
    %641 = vmatpush1.msra.mxu0 %v205
    %642 = vmatprep.subr.mxu0 0.0
    %643 = vmatpush1.msra.mxu0 %v204
    %644 = vmatprep.subr.mxu0 0.0
    %645 = vmatpush1.msra.mxu0 %v203
    %646 = vmatprep.subr.mxu0 0.0
    %647 = vmatpush1.msra.mxu0 %v202
    %648 = vmatprep.subr.mxu0 0.0
    %649 = vmatpush2.msra.mxu0 0.0
    %650 = vmatprep.subr.mxu0 0.0
    %651 = vmatpush2.msra.mxu0 0.0
    %652 = vmatprep.subr.mxu0 0.0
    %653 = vmatpush2.msra.mxu0 0.0
    %654 = vmatprep.subr.mxu0 0.0
    %655 = vmatpush2.msra.mxu0 0.0
    %656 = vmatprep.subr.mxu0 0.0
    %657 = vmatpush2.msra.mxu0 0.0
    %658 = vmatprep.subr.mxu0 0.0
    %659 = vmatpush2.msra.mxu0 0.0
    %660 = vmatprep.subr.mxu0 0.0
    %661 = vmatpush2.msra.mxu0 0.0
    %662 = vmatprep.subr.mxu0 0.0
    %663 = vmatpush2.msra.mxu0 0.0
    %664 = vmatprep.subr.mxu0 0.0
    %665 = vmatpush2.msra.mxu0 0.0
    %666 = vmatprep.subr.mxu0 0.0
    %667 = vmatpush2.msra.mxu0 0.0
    %668 = vmatprep.subr.mxu0 0.0
    %669 = vmatpush2.msra.mxu0 0.0
    %670 = vmatprep.subr.mxu0 0.0
    %671 = vmatpush2.msra.mxu0 0.0
    %672 = vmatprep.subr.mxu0 0.0
    %673 = vmatpush2.msra.mxu0 0.0
    %674 = vmatprep.subr.mxu0 0.0
    %675 = vmatpush2.msra.mxu0 0.0
    %676 = vmatprep.subr.mxu0 0.0
    %677 = vmatpush2.msra.mxu0 0.0
    %678 = vmatprep.subr.mxu0 0.0
    %679 = vmatpush2.msra.mxu0 0.0
    %680 = vmatprep.mubr.f32.mxu0 0.0
    %681 = vmatmul.mubr.f32.gmra.mxu0 %v614
    %v682 = vpop.f32.mrf.mxu0
    %v683 = vadd.f32 0.0, %v682
    %v684 = vpop.f32.mrf.mxu0
    %685 = vdwg.mxu0
    %v686 = vadd.f32 %v613, %v683
    %v687 = vmul.f32 %v686, 0.5
    %v688 = vtanh.pop %v687
    %v689 = vmul.f32 %v688, 0.5
    %v690 = vadd.f32 %v689, 0.5
    %v691 = vtanh.pop %v686
    %v692 = vmul.f32 %v690, %v601
    %694 = vrot.lane.b32.xlu0 %v691, 64
    %v695 = vpop.permute.xlu0 %694
    %v697 = vmul.f32 %v690, %v695
    %699 = vrot.lane.b32.xlu0 %v697, 32
    %v700 = vpop.permute.xlu0 %699
    %v702 = vadd.f32 %v692, %v700
    %v703 = vtanh.pop %v702
    %705 = vrot.lane.b32.xlu0 %v703, 64
    %v706 = vpop.permute.xlu0 %705
    %v708 = vmul.f32 %v690, %v706
    %710 = vrot.lane.b32.xlu0 %v708, 32
    %v711 = vpop.permute.xlu0 %710
    %713 = vst.msk [vmem:[#allocation3 + $0x4] sm:$0x1] %vm308, %v711
    %v714 = vld [vmem:[#allocation2 + $0x5] sm:$0x1]
    %v715 = vsel %vm207, %v711, 0
    %717 = vmatprep.subr.mxu0 0.0
    %718 = vmatpush1.msra.mxu0 0.0
    %719 = vmatprep.subr.mxu0 0.0
    %720 = vmatpush1.msra.mxu0 0.0
    %721 = vmatprep.subr.mxu0 0.0
    %722 = vmatpush1.msra.mxu0 0.0
    %723 = vmatprep.subr.mxu0 0.0
    %724 = vmatpush1.msra.mxu0 0.0
    %725 = vmatprep.subr.mxu0 0.0
    %726 = vmatpush1.msra.mxu0 0.0
    %727 = vmatprep.subr.mxu0 0.0
    %728 = vmatpush1.msra.mxu0 0.0
    %729 = vmatprep.subr.mxu0 0.0
    %730 = vmatpush1.msra.mxu0 0.0
    %731 = vmatprep.subr.mxu0 0.0
    %732 = vmatpush1.msra.mxu0 0.0
    %733 = vmatprep.subr.mxu0 0.0
    %734 = vmatpush1.msra.mxu0 0.0
    %735 = vmatprep.subr.mxu0 0.0
    %736 = vmatpush1.msra.mxu0 0.0
    %737 = vmatprep.subr.mxu0 0.0
    %738 = vmatpush1.msra.mxu0 0.0
    %739 = vmatprep.subr.mxu0 0.0
    %740 = vmatpush1.msra.mxu0 0.0
    %741 = vmatprep.subr.mxu0 0.0
    %742 = vmatpush1.msra.mxu0 %v205
    %743 = vmatprep.subr.mxu0 0.0
    %744 = vmatpush1.msra.mxu0 %v204
    %745 = vmatprep.subr.mxu0 0.0
    %746 = vmatpush1.msra.mxu0 %v203
    %747 = vmatprep.subr.mxu0 0.0
    %748 = vmatpush1.msra.mxu0 %v202
    %749 = vmatprep.subr.mxu0 0.0
    %750 = vmatpush2.msra.mxu0 0.0
    %751 = vmatprep.subr.mxu0 0.0
    %752 = vmatpush2.msra.mxu0 0.0
    %753 = vmatprep.subr.mxu0 0.0
    %754 = vmatpush2.msra.mxu0 0.0
    %755 = vmatprep.subr.mxu0 0.0
    %756 = vmatpush2.msra.mxu0 0.0
    %757 = vmatprep.subr.mxu0 0.0
    %758 = vmatpush2.msra.mxu0 0.0
    %759 = vmatprep.subr.mxu0 0.0
    %760 = vmatpush2.msra.mxu0 0.0
    %761 = vmatprep.subr.mxu0 0.0
    %762 = vmatpush2.msra.mxu0 0.0
    %763 = vmatprep.subr.mxu0 0.0
    %764 = vmatpush2.msra.mxu0 0.0
    %765 = vmatprep.subr.mxu0 0.0
    %766 = vmatpush2.msra.mxu0 0.0
    %767 = vmatprep.subr.mxu0 0.0
    %768 = vmatpush2.msra.mxu0 0.0
    %769 = vmatprep.subr.mxu0 0.0
    %770 = vmatpush2.msra.mxu0 0.0
    %771 = vmatprep.subr.mxu0 0.0
    %772 = vmatpush2.msra.mxu0 0.0
    %773 = vmatprep.subr.mxu0 0.0
    %774 = vmatpush2.msra.mxu0 0.0
    %775 = vmatprep.subr.mxu0 0.0
    %776 = vmatpush2.msra.mxu0 0.0
    %777 = vmatprep.subr.mxu0 0.0
    %778 = vmatpush2.msra.mxu0 0.0
    %779 = vmatprep.subr.mxu0 0.0
    %780 = vmatpush2.msra.mxu0 0.0
    %781 = vmatprep.mubr.f32.mxu0 0.0
    %782 = vmatmul.mubr.f32.gmra.mxu0 %v715
    %v783 = vpop.f32.mrf.mxu0
    %v784 = vadd.f32 0.0, %v783
    %v785 = vpop.f32.mrf.mxu0
    %786 = vdwg.mxu0
    %v787 = vadd.f32 %v714, %v784
    %v788 = vmul.f32 %v787, 0.5
    %v789 = vtanh.pop %v788
    %v790 = vmul.f32 %v789, 0.5
    %v791 = vadd.f32 %v790, 0.5
    %v792 = vtanh.pop %v787
    %v793 = vmul.f32 %v791, %v702
    %795 = vrot.lane.b32.xlu0 %v792, 64
    %v796 = vpop.permute.xlu0 %795
    %v798 = vmul.f32 %v791, %v796
    %800 = vrot.lane.b32.xlu0 %v798, 32
    %v801 = vpop.permute.xlu0 %800
    %v803 = vadd.f32 %v793, %v801
    %v804 = vtanh.pop %v803
    %806 = vrot.lane.b32.xlu0 %v804, 64
    %v807 = vpop.permute.xlu0 %806
    %v809 = vmul.f32 %v791, %v807
    %811 = vrot.lane.b32.xlu0 %v809, 32
    %v812 = vpop.permute.xlu0 %811
    %814 = vst.msk [vmem:[#allocation3 + $0x5] sm:$0x1] %vm308, %v812
    %v815 = vld [vmem:[#allocation2 + $0x6] sm:$0x1]
    %v816 = vsel %vm207, %v812, 0
    %818 = vmatprep.subr.mxu0 0.0
    %819 = vmatpush1.msra.mxu0 0.0
    %820 = vmatprep.subr.mxu0 0.0
    %821 = vmatpush1.msra.mxu0 0.0
    %822 = vmatprep.subr.mxu0 0.0
    %823 = vmatpush1.msra.mxu0 0.0
    %824 = vmatprep.subr.mxu0 0.0
    %825 = vmatpush1.msra.mxu0 0.0
    %826 = vmatprep.subr.mxu0 0.0
    %827 = vmatpush1.msra.mxu0 0.0
    %828 = vmatprep.subr.mxu0 0.0
    %829 = vmatpush1.msra.mxu0 0.0
    %830 = vmatprep.subr.mxu0 0.0
    %831 = vmatpush1.msra.mxu0 0.0
    %832 = vmatprep.subr.mxu0 0.0
    %833 = vmatpush1.msra.mxu0 0.0
    %834 = vmatprep.subr.mxu0 0.0
    %835 = vmatpush1.msra.mxu0 0.0
    %836 = vmatprep.subr.mxu0 0.0
    %837 = vmatpush1.msra.mxu0 0.0
    %838 = vmatprep.subr.mxu0 0.0
    %839 = vmatpush1.msra.mxu0 0.0
    %840 = vmatprep.subr.mxu0 0.0
    %841 = vmatpush1.msra.mxu0 0.0
    %842 = vmatprep.subr.mxu0 0.0
    %843 = vmatpush1.msra.mxu0 %v205
    %844 = vmatprep.subr.mxu0 0.0
    %845 = vmatpush1.msra.mxu0 %v204
    %846 = vmatprep.subr.mxu0 0.0
    %847 = vmatpush1.msra.mxu0 %v203
    %848 = vmatprep.subr.mxu0 0.0
    %849 = vmatpush1.msra.mxu0 %v202
    %850 = vmatprep.subr.mxu0 0.0
    %851 = vmatpush2.msra.mxu0 0.0
    %852 = vmatprep.subr.mxu0 0.0
    %853 = vmatpush2.msra.mxu0 0.0
    %854 = vmatprep.subr.mxu0 0.0
    %855 = vmatpush2.msra.mxu0 0.0
    %856 = vmatprep.subr.mxu0 0.0
    %857 = vmatpush2.msra.mxu0 0.0
    %858 = vmatprep.subr.mxu0 0.0
    %859 = vmatpush2.msra.mxu0 0.0
    %860 = vmatprep.subr.mxu0 0.0
    %861 = vmatpush2.msra.mxu0 0.0
    %862 = vmatprep.subr.mxu0 0.0
    %863 = vmatpush2.msra.mxu0 0.0
    %864 = vmatprep.subr.mxu0 0.0
    %865 = vmatpush2.msra.mxu0 0.0
    %866 = vmatprep.subr.mxu0 0.0
    %867 = vmatpush2.msra.mxu0 0.0
    %868 = vmatprep.subr.mxu0 0.0
    %869 = vmatpush2.msra.mxu0 0.0
    %870 = vmatprep.subr.mxu0 0.0
    %871 = vmatpush2.msra.mxu0 0.0
    %872 = vmatprep.subr.mxu0 0.0
    %873 = vmatpush2.msra.mxu0 0.0
    %874 = vmatprep.subr.mxu0 0.0
    %875 = vmatpush2.msra.mxu0 0.0
    %876 = vmatprep.subr.mxu0 0.0
    %877 = vmatpush2.msra.mxu0 0.0
    %878 = vmatprep.subr.mxu0 0.0
    %879 = vmatpush2.msra.mxu0 0.0
    %880 = vmatprep.subr.mxu0 0.0
    %881 = vmatpush2.msra.mxu0 0.0
    %882 = vmatprep.mubr.f32.mxu0 0.0
    %883 = vmatmul.mubr.f32.gmra.mxu0 %v816
    %v884 = vpop.f32.mrf.mxu0
    %v885 = vadd.f32 0.0, %v884
    %v886 = vpop.f32.mrf.mxu0
    %887 = vdwg.mxu0
    %v888 = vadd.f32 %v815, %v885
    %v889 = vmul.f32 %v888, 0.5
    %v890 = vtanh.pop %v889
    %v891 = vmul.f32 %v890, 0.5
    %v892 = vadd.f32 %v891, 0.5
    %v893 = vtanh.pop %v888
    %v894 = vmul.f32 %v892, %v803
    %896 = vrot.lane.b32.xlu0 %v893, 64
    %v897 = vpop.permute.xlu0 %896
    %v899 = vmul.f32 %v892, %v897
    %901 = vrot.lane.b32.xlu0 %v899, 32
    %v902 = vpop.permute.xlu0 %901
    %v904 = vadd.f32 %v894, %v902
    %v905 = vtanh.pop %v904
    %907 = vrot.lane.b32.xlu0 %v905, 64
    %v908 = vpop.permute.xlu0 %907
    %v910 = vmul.f32 %v892, %v908
    %912 = vrot.lane.b32.xlu0 %v910, 32
    %v913 = vpop.permute.xlu0 %912
    %915 = vst.msk [vmem:[#allocation3 + $0x6] sm:$0x1] %vm308, %v913
    %v916 = vld [vmem:[#allocation2 + $0x7] sm:$0x1]
    %v917 = vsel %vm207, %v913, 0
    %919 = vmatprep.subr.mxu0 0.0
    %920 = vmatpush1.msra.mxu0 0.0
    %921 = vmatprep.subr.mxu0 0.0
    %922 = vmatpush1.msra.mxu0 0.0
    %923 = vmatprep.subr.mxu0 0.0
    %924 = vmatpush1.msra.mxu0 0.0
    %925 = vmatprep.subr.mxu0 0.0
    %926 = vmatpush1.msra.mxu0 0.0
    %927 = vmatprep.subr.mxu0 0.0
    %928 = vmatpush1.msra.mxu0 0.0
    %929 = vmatprep.subr.mxu0 0.0
    %930 = vmatpush1.msra.mxu0 0.0
    %931 = vmatprep.subr.mxu0 0.0
    %932 = vmatpush1.msra.mxu0 0.0
    %933 = vmatprep.subr.mxu0 0.0
    %934 = vmatpush1.msra.mxu0 0.0
    %935 = vmatprep.subr.mxu0 0.0
    %936 = vmatpush1.msra.mxu0 0.0
    %937 = vmatprep.subr.mxu0 0.0
    %938 = vmatpush1.msra.mxu0 0.0
    %939 = vmatprep.subr.mxu0 0.0
    %940 = vmatpush1.msra.mxu0 0.0
    %941 = vmatprep.subr.mxu0 0.0
    %942 = vmatpush1.msra.mxu0 0.0
    %943 = vmatprep.subr.mxu0 0.0
    %944 = vmatpush1.msra.mxu0 %v205
    %945 = vmatprep.subr.mxu0 0.0
    %946 = vmatpush1.msra.mxu0 %v204
    %947 = vmatprep.subr.mxu0 0.0
    %948 = vmatpush1.msra.mxu0 %v203
    %949 = vmatprep.subr.mxu0 0.0
    %950 = vmatpush1.msra.mxu0 %v202
    %951 = vmatprep.subr.mxu0 0.0
    %952 = vmatpush2.msra.mxu0 0.0
    %953 = vmatprep.subr.mxu0 0.0
    %954 = vmatpush2.msra.mxu0 0.0
    %955 = vmatprep.subr.mxu0 0.0
    %956 = vmatpush2.msra.mxu0 0.0
    %957 = vmatprep.subr.mxu0 0.0
    %958 = vmatpush2.msra.mxu0 0.0
    %959 = vmatprep.subr.mxu0 0.0
    %960 = vmatpush2.msra.mxu0 0.0
    %961 = vmatprep.subr.mxu0 0.0
    %962 = vmatpush2.msra.mxu0 0.0
    %963 = vmatprep.subr.mxu0 0.0
    %964 = vmatpush2.msra.mxu0 0.0
    %965 = vmatprep.subr.mxu0 0.0
    %966 = vmatpush2.msra.mxu0 0.0
    %967 = vmatprep.subr.mxu0 0.0
    %968 = vmatpush2.msra.mxu0 0.0
    %969 = vmatprep.subr.mxu0 0.0
    %970 = vmatpush2.msra.mxu0 0.0
    %971 = vmatprep.subr.mxu0 0.0
    %972 = vmatpush2.msra.mxu0 0.0
    %973 = vmatprep.subr.mxu0 0.0
    %974 = vmatpush2.msra.mxu0 0.0
    %975 = vmatprep.subr.mxu0 0.0
    %976 = vmatpush2.msra.mxu0 0.0
    %977 = vmatprep.subr.mxu0 0.0
    %978 = vmatpush2.msra.mxu0 0.0
    %979 = vmatprep.subr.mxu0 0.0
    %980 = vmatpush2.msra.mxu0 0.0
    %981 = vmatprep.subr.mxu0 0.0
    %982 = vmatpush2.msra.mxu0 0.0
    %983 = vmatprep.mubr.f32.mxu0 0.0
    %984 = vmatmul.mubr.f32.gmra.mxu0 %v917
    %v985 = vpop.f32.mrf.mxu0
    %v986 = vadd.f32 0.0, %v985
    %v987 = vpop.f32.mrf.mxu0
    %988 = vdwg.mxu0
    %v989 = vadd.f32 %v916, %v986
    %v990 = vmul.f32 %v989, 0.5
    %v991 = vtanh.pop %v990
    %v992 = vmul.f32 %v991, 0.5
    %v993 = vadd.f32 %v992, 0.5
    %v994 = vtanh.pop %v989
    %v995 = vmul.f32 %v993, %v904
    %997 = vrot.lane.b32.xlu0 %v994, 64
    %v998 = vpop.permute.xlu0 %997
    %v1000 = vmul.f32 %v993, %v998
    %1002 = vrot.lane.b32.xlu0 %v1000, 32
    %v1003 = vpop.permute.xlu0 %1002
    %v1005 = vadd.f32 %v995, %v1003
    %v1006 = vtanh.pop %v1005
    %1008 = vrot.lane.b32.xlu0 %v1006, 64
    %v1009 = vpop.permute.xlu0 %1008
    %v1011 = vmul.f32 %v993, %v1009
    %1013 = vrot.lane.b32.xlu0 %v1011, 32
    %v1014 = vpop.permute.xlu0 %1013
    %1016 = vst.msk [vmem:[#allocation3 + $0x7] sm:$0x1] %vm308, %v1014
    %v1017 = vld [vmem:[#allocation2 + $0x8] sm:$0x1]
    %v1018 = vsel %vm207, %v1014, 0
    %1020 = vmatprep.subr.mxu0 0.0
    %1021 = vmatpush1.msra.mxu0 0.0
    %1022 = vmatprep.subr.mxu0 0.0
    %1023 = vmatpush1.msra.mxu0 0.0
    %1024 = vmatprep.subr.mxu0 0.0
    %1025 = vmatpush1.msra.mxu0 0.0
    %1026 = vmatprep.subr.mxu0 0.0
    %1027 = vmatpush1.msra.mxu0 0.0
    %1028 = vmatprep.subr.mxu0 0.0
    %1029 = vmatpush1.msra.mxu0 0.0
    %1030 = vmatprep.subr.mxu0 0.0
    %1031 = vmatpush1.msra.mxu0 0.0
    %1032 = vmatprep.subr.mxu0 0.0
    %1033 = vmatpush1.msra.mxu0 0.0
    %1034 = vmatprep.subr.mxu0 0.0
    %1035 = vmatpush1.msra.mxu0 0.0
    %1036 = vmatprep.subr.mxu0 0.0
    %1037 = vmatpush1.msra.mxu0 0.0
    %1038 = vmatprep.subr.mxu0 0.0
    %1039 = vmatpush1.msra.mxu0 0.0
    %1040 = vmatprep.subr.mxu0 0.0
    %1041 = vmatpush1.msra.mxu0 0.0
    %1042 = vmatprep.subr.mxu0 0.0
    %1043 = vmatpush1.msra.mxu0 0.0
    %1044 = vmatprep.subr.mxu0 0.0
    %1045 = vmatpush1.msra.mxu0 %v205
    %1046 = vmatprep.subr.mxu0 0.0
    %1047 = vmatpush1.msra.mxu0 %v204
    %1048 = vmatprep.subr.mxu0 0.0
    %1049 = vmatpush1.msra.mxu0 %v203
    %1050 = vmatprep.subr.mxu0 0.0
    %1051 = vmatpush1.msra.mxu0 %v202
    %1052 = vmatprep.subr.mxu0 0.0
    %1053 = vmatpush2.msra.mxu0 0.0
    %1054 = vmatprep.subr.mxu0 0.0
    %1055 = vmatpush2.msra.mxu0 0.0
    %1056 = vmatprep.subr.mxu0 0.0
    %1057 = vmatpush2.msra.mxu0 0.0
    %1058 = vmatprep.subr.mxu0 0.0
    %1059 = vmatpush2.msra.mxu0 0.0
    %1060 = vmatprep.subr.mxu0 0.0
    %1061 = vmatpush2.msra.mxu0 0.0
    %1062 = vmatprep.subr.mxu0 0.0
    %1063 = vmatpush2.msra.mxu0 0.0
    %1064 = vmatprep.subr.mxu0 0.0
    %1065 = vmatpush2.msra.mxu0 0.0
    %1066 = vmatprep.subr.mxu0 0.0
    %1067 = vmatpush2.msra.mxu0 0.0
    %1068 = vmatprep.subr.mxu0 0.0
    %1069 = vmatpush2.msra.mxu0 0.0
    %1070 = vmatprep.subr.mxu0 0.0
    %1071 = vmatpush2.msra.mxu0 0.0
    %1072 = vmatprep.subr.mxu0 0.0
    %1073 = vmatpush2.msra.mxu0 0.0
    %1074 = vmatprep.subr.mxu0 0.0
    %1075 = vmatpush2.msra.mxu0 0.0
    %1076 = vmatprep.subr.mxu0 0.0
    %1077 = vmatpush2.msra.mxu0 0.0
    %1078 = vmatprep.subr.mxu0 0.0
    %1079 = vmatpush2.msra.mxu0 0.0
    %1080 = vmatprep.subr.mxu0 0.0
    %1081 = vmatpush2.msra.mxu0 0.0
    %1082 = vmatprep.subr.mxu0 0.0
    %1083 = vmatpush2.msra.mxu0 0.0
    %1084 = vmatprep.mubr.f32.mxu0 0.0
    %1085 = vmatmul.mubr.f32.gmra.mxu0 %v1018
    %v1086 = vpop.f32.mrf.mxu0
    %v1087 = vadd.f32 0.0, %v1086
    %v1088 = vpop.f32.mrf.mxu0
    %1089 = vdwg.mxu0
    %v1090 = vadd.f32 %v1017, %v1087
    %v1091 = vmul.f32 %v1090, 0.5
    %v1092 = vtanh.pop %v1091
    %v1093 = vmul.f32 %v1092, 0.5
    %v1094 = vadd.f32 %v1093, 0.5
    %v1095 = vtanh.pop %v1090
    %v1096 = vmul.f32 %v1094, %v1005
    %1098 = vrot.lane.b32.xlu0 %v1095, 64
    %v1099 = vpop.permute.xlu0 %1098
    %v1101 = vmul.f32 %v1094, %v1099
    %1103 = vrot.lane.b32.xlu0 %v1101, 32
    %v1104 = vpop.permute.xlu0 %1103
    %v1106 = vadd.f32 %v1096, %v1104
    %v1107 = vtanh.pop %v1106
    %1109 = vrot.lane.b32.xlu0 %v1107, 64
    %v1110 = vpop.permute.xlu0 %1109
    %v1112 = vmul.f32 %v1094, %v1110
    %1114 = vrot.lane.b32.xlu0 %v1112, 32
    %v1115 = vpop.permute.xlu0 %1114
    %1117 = vst.msk [vmem:[#allocation3 + $0x8] sm:$0x1] %vm308, %v1115
    %v1118 = vld [vmem:[#allocation2 + $0x9] sm:$0x1]
    %v1119 = vsel %vm207, %v1115, 0
    %1121 = vmatprep.subr.mxu0 0.0
    %1122 = vmatpush1.msra.mxu0 0.0
    %1123 = vmatprep.subr.mxu0 0.0
    %1124 = vmatpush1.msra.mxu0 0.0
    %1125 = vmatprep.subr.mxu0 0.0
    %1126 = vmatpush1.msra.mxu0 0.0
    %1127 = vmatprep.subr.mxu0 0.0
    %1128 = vmatpush1.msra.mxu0 0.0
    %1129 = vmatprep.subr.mxu0 0.0
    %1130 = vmatpush1.msra.mxu0 0.0
    %1131 = vmatprep.subr.mxu0 0.0
    %1132 = vmatpush1.msra.mxu0 0.0
    %1133 = vmatprep.subr.mxu0 0.0
    %1134 = vmatpush1.msra.mxu0 0.0
    %1135 = vmatprep.subr.mxu0 0.0
    %1136 = vmatpush1.msra.mxu0 0.0
    %1137 = vmatprep.subr.mxu0 0.0
    %1138 = vmatpush1.msra.mxu0 0.0
    %1139 = vmatprep.subr.mxu0 0.0
    %1140 = vmatpush1.msra.mxu0 0.0
    %1141 = vmatprep.subr.mxu0 0.0
    %1142 = vmatpush1.msra.mxu0 0.0
    %1143 = vmatprep.subr.mxu0 0.0
    %1144 = vmatpush1.msra.mxu0 0.0
    %1145 = vmatprep.subr.mxu0 0.0
    %1146 = vmatpush1.msra.mxu0 %v205
    %1147 = vmatprep.subr.mxu0 0.0
    %1148 = vmatpush1.msra.mxu0 %v204
    %1149 = vmatprep.subr.mxu0 0.0
    %1150 = vmatpush1.msra.mxu0 %v203
    %1151 = vmatprep.subr.mxu0 0.0
    %1152 = vmatpush1.msra.mxu0 %v202
    %1153 = vmatprep.subr.mxu0 0.0
    %1154 = vmatpush2.msra.mxu0 0.0
    %1155 = vmatprep.subr.mxu0 0.0
    %1156 = vmatpush2.msra.mxu0 0.0
    %1157 = vmatprep.subr.mxu0 0.0
    %1158 = vmatpush2.msra.mxu0 0.0
    %1159 = vmatprep.subr.mxu0 0.0
    %1160 = vmatpush2.msra.mxu0 0.0
    %1161 = vmatprep.subr.mxu0 0.0
    %1162 = vmatpush2.msra.mxu0 0.0
    %1163 = vmatprep.subr.mxu0 0.0
    %1164 = vmatpush2.msra.mxu0 0.0
    %1165 = vmatprep.subr.mxu0 0.0
    %1166 = vmatpush2.msra.mxu0 0.0
    %1167 = vmatprep.subr.mxu0 0.0
    %1168 = vmatpush2.msra.mxu0 0.0
    %1169 = vmatprep.subr.mxu0 0.0
    %1170 = vmatpush2.msra.mxu0 0.0
    %1171 = vmatprep.subr.mxu0 0.0
    %1172 = vmatpush2.msra.mxu0 0.0
    %1173 = vmatprep.subr.mxu0 0.0
    %1174 = vmatpush2.msra.mxu0 0.0
    %1175 = vmatprep.subr.mxu0 0.0
    %1176 = vmatpush2.msra.mxu0 0.0
    %1177 = vmatprep.subr.mxu0 0.0
    %1178 = vmatpush2.msra.mxu0 0.0
    %1179 = vmatprep.subr.mxu0 0.0
    %1180 = vmatpush2.msra.mxu0 0.0
    %1181 = vmatprep.subr.mxu0 0.0
    %1182 = vmatpush2.msra.mxu0 0.0
    %1183 = vmatprep.subr.mxu0 0.0
    %1184 = vmatpush2.msra.mxu0 0.0
    %1185 = vmatprep.mubr.f32.mxu0 0.0
    %1186 = vmatmul.mubr.f32.gmra.mxu0 %v1119
    %v1187 = vpop.f32.mrf.mxu0
    %v1188 = vadd.f32 0.0, %v1187
    %v1189 = vpop.f32.mrf.mxu0
    %1190 = vdwg.mxu0
    %v1191 = vadd.f32 %v1118, %v1188
    %v1192 = vmul.f32 %v1191, 0.5
    %v1193 = vtanh.pop %v1192
    %v1194 = vmul.f32 %v1193, 0.5
    %v1195 = vadd.f32 %v1194, 0.5
    %v1196 = vtanh.pop %v1191
    %v1197 = vmul.f32 %v1195, %v1106
    %1199 = vrot.lane.b32.xlu0 %v1196, 64
    %v1200 = vpop.permute.xlu0 %1199
    %v1202 = vmul.f32 %v1195, %v1200
    %1204 = vrot.lane.b32.xlu0 %v1202, 32
    %v1205 = vpop.permute.xlu0 %1204
    %v1207 = vadd.f32 %v1197, %v1205
    %v1208 = vtanh.pop %v1207
    %1210 = vrot.lane.b32.xlu0 %v1208, 64
    %v1211 = vpop.permute.xlu0 %1210
    %v1213 = vmul.f32 %v1195, %v1211
    %1215 = vrot.lane.b32.xlu0 %v1213, 32
    %v1216 = vpop.permute.xlu0 %1215
    %1218 = vst.msk [vmem:[#allocation3 + $0x9] sm:$0x1] %vm308, %v1216
    %v1219 = vld [vmem:[#allocation2 + $0xa] sm:$0x1]
    %v1220 = vsel %vm207, %v1216, 0
    %1222 = vmatprep.subr.mxu0 0.0
    %1223 = vmatpush1.msra.mxu0 0.0
    %1224 = vmatprep.subr.mxu0 0.0
    %1225 = vmatpush1.msra.mxu0 0.0
    %1226 = vmatprep.subr.mxu0 0.0
    %1227 = vmatpush1.msra.mxu0 0.0
    %1228 = vmatprep.subr.mxu0 0.0
    %1229 = vmatpush1.msra.mxu0 0.0
    %1230 = vmatprep.subr.mxu0 0.0
    %1231 = vmatpush1.msra.mxu0 0.0
    %1232 = vmatprep.subr.mxu0 0.0
    %1233 = vmatpush1.msra.mxu0 0.0
    %1234 = vmatprep.subr.mxu0 0.0
    %1235 = vmatpush1.msra.mxu0 0.0
    %1236 = vmatprep.subr.mxu0 0.0
    %1237 = vmatpush1.msra.mxu0 0.0
    %1238 = vmatprep.subr.mxu0 0.0
    %1239 = vmatpush1.msra.mxu0 0.0
    %1240 = vmatprep.subr.mxu0 0.0
    %1241 = vmatpush1.msra.mxu0 0.0
    %1242 = vmatprep.subr.mxu0 0.0
    %1243 = vmatpush1.msra.mxu0 0.0
    %1244 = vmatprep.subr.mxu0 0.0
    %1245 = vmatpush1.msra.mxu0 0.0
    %1246 = vmatprep.subr.mxu0 0.0
    %1247 = vmatpush1.msra.mxu0 %v205
    %1248 = vmatprep.subr.mxu0 0.0
    %1249 = vmatpush1.msra.mxu0 %v204
    %1250 = vmatprep.subr.mxu0 0.0
    %1251 = vmatpush1.msra.mxu0 %v203
    %1252 = vmatprep.subr.mxu0 0.0
    %1253 = vmatpush1.msra.mxu0 %v202
    %1254 = vmatprep.subr.mxu0 0.0
    %1255 = vmatpush2.msra.mxu0 0.0
    %1256 = vmatprep.subr.mxu0 0.0
    %1257 = vmatpush2.msra.mxu0 0.0
    %1258 = vmatprep.subr.mxu0 0.0
    %1259 = vmatpush2.msra.mxu0 0.0
    %1260 = vmatprep.subr.mxu0 0.0
    %1261 = vmatpush2.msra.mxu0 0.0
    %1262 = vmatprep.subr.mxu0 0.0
    %1263 = vmatpush2.msra.mxu0 0.0
    %1264 = vmatprep.subr.mxu0 0.0
    %1265 = vmatpush2.msra.mxu0 0.0
    %1266 = vmatprep.subr.mxu0 0.0
    %1267 = vmatpush2.msra.mxu0 0.0
    %1268 = vmatprep.subr.mxu0 0.0
    %1269 = vmatpush2.msra.mxu0 0.0
    %1270 = vmatprep.subr.mxu0 0.0
    %1271 = vmatpush2.msra.mxu0 0.0
    %1272 = vmatprep.subr.mxu0 0.0
    %1273 = vmatpush2.msra.mxu0 0.0
    %1274 = vmatprep.subr.mxu0 0.0
    %1275 = vmatpush2.msra.mxu0 0.0
    %1276 = vmatprep.subr.mxu0 0.0
    %1277 = vmatpush2.msra.mxu0 0.0
    %1278 = vmatprep.subr.mxu0 0.0
    %1279 = vmatpush2.msra.mxu0 0.0
    %1280 = vmatprep.subr.mxu0 0.0
    %1281 = vmatpush2.msra.mxu0 0.0
    %1282 = vmatprep.subr.mxu0 0.0
    %1283 = vmatpush2.msra.mxu0 0.0
    %1284 = vmatprep.subr.mxu0 0.0
    %1285 = vmatpush2.msra.mxu0 0.0
    %1286 = vmatprep.mubr.f32.mxu0 0.0
    %1287 = vmatmul.mubr.f32.gmra.mxu0 %v1220
    %v1288 = vpop.f32.mrf.mxu0
    %v1289 = vadd.f32 0.0, %v1288
    %v1290 = vpop.f32.mrf.mxu0
    %1291 = vdwg.mxu0
    %v1292 = vadd.f32 %v1219, %v1289
    %v1293 = vmul.f32 %v1292, 0.5
    %v1294 = vtanh.pop %v1293
    %v1295 = vmul.f32 %v1294, 0.5
    %v1296 = vadd.f32 %v1295, 0.5
    %v1297 = vtanh.pop %v1292
    %v1298 = vmul.f32 %v1296, %v1207
    %1300 = vrot.lane.b32.xlu0 %v1297, 64
    %v1301 = vpop.permute.xlu0 %1300
    %v1303 = vmul.f32 %v1296, %v1301
    %1305 = vrot.lane.b32.xlu0 %v1303, 32
    %v1306 = vpop.permute.xlu0 %1305
    %v1308 = vadd.f32 %v1298, %v1306
    %v1309 = vtanh.pop %v1308
    %1311 = vrot.lane.b32.xlu0 %v1309, 64
    %v1312 = vpop.permute.xlu0 %1311
    %v1314 = vmul.f32 %v1296, %v1312
    %1316 = vrot.lane.b32.xlu0 %v1314, 32
    %v1317 = vpop.permute.xlu0 %1316
    %1319 = vst.msk [vmem:[#allocation3 + $0xa] sm:$0x1] %vm308, %v1317
    %v1320 = vld [vmem:[#allocation2 + $0xb] sm:$0x1]
    %v1321 = vsel %vm207, %v1317, 0
    %1323 = vmatprep.subr.mxu0 0.0
    %1324 = vmatpush1.msra.mxu0 0.0
    %1325 = vmatprep.subr.mxu0 0.0
    %1326 = vmatpush1.msra.mxu0 0.0
    %1327 = vmatprep.subr.mxu0 0.0
    %1328 = vmatpush1.msra.mxu0 0.0
    %1329 = vmatprep.subr.mxu0 0.0
    %1330 = vmatpush1.msra.mxu0 0.0
    %1331 = vmatprep.subr.mxu0 0.0
    %1332 = vmatpush1.msra.mxu0 0.0
    %1333 = vmatprep.subr.mxu0 0.0
    %1334 = vmatpush1.msra.mxu0 0.0
    %1335 = vmatprep.subr.mxu0 0.0
    %1336 = vmatpush1.msra.mxu0 0.0
    %1337 = vmatprep.subr.mxu0 0.0
    %1338 = vmatpush1.msra.mxu0 0.0
    %1339 = vmatprep.subr.mxu0 0.0
    %1340 = vmatpush1.msra.mxu0 0.0
    %1341 = vmatprep.subr.mxu0 0.0
    %1342 = vmatpush1.msra.mxu0 0.0
    %1343 = vmatprep.subr.mxu0 0.0
    %1344 = vmatpush1.msra.mxu0 0.0
    %1345 = vmatprep.subr.mxu0 0.0
    %1346 = vmatpush1.msra.mxu0 0.0
    %1347 = vmatprep.subr.mxu0 0.0
    %1348 = vmatpush1.msra.mxu0 %v205
    %1349 = vmatprep.subr.mxu0 0.0
    %1350 = vmatpush1.msra.mxu0 %v204
    %1351 = vmatprep.subr.mxu0 0.0
    %1352 = vmatpush1.msra.mxu0 %v203
    %1353 = vmatprep.subr.mxu0 0.0
    %1354 = vmatpush1.msra.mxu0 %v202
    %1355 = vmatprep.subr.mxu0 0.0
    %1356 = vmatpush2.msra.mxu0 0.0
    %1357 = vmatprep.subr.mxu0 0.0
    %1358 = vmatpush2.msra.mxu0 0.0
    %1359 = vmatprep.subr.mxu0 0.0
    %1360 = vmatpush2.msra.mxu0 0.0
    %1361 = vmatprep.subr.mxu0 0.0
    %1362 = vmatpush2.msra.mxu0 0.0
    %1363 = vmatprep.subr.mxu0 0.0
    %1364 = vmatpush2.msra.mxu0 0.0
    %1365 = vmatprep.subr.mxu0 0.0
    %1366 = vmatpush2.msra.mxu0 0.0
    %1367 = vmatprep.subr.mxu0 0.0
    %1368 = vmatpush2.msra.mxu0 0.0
    %1369 = vmatprep.subr.mxu0 0.0
    %1370 = vmatpush2.msra.mxu0 0.0
    %1371 = vmatprep.subr.mxu0 0.0
    %1372 = vmatpush2.msra.mxu0 0.0
    %1373 = vmatprep.subr.mxu0 0.0
    %1374 = vmatpush2.msra.mxu0 0.0
    %1375 = vmatprep.subr.mxu0 0.0
    %1376 = vmatpush2.msra.mxu0 0.0
    %1377 = vmatprep.subr.mxu0 0.0
    %1378 = vmatpush2.msra.mxu0 0.0
    %1379 = vmatprep.subr.mxu0 0.0
    %1380 = vmatpush2.msra.mxu0 0.0
    %1381 = vmatprep.subr.mxu0 0.0
    %1382 = vmatpush2.msra.mxu0 0.0
    %1383 = vmatprep.subr.mxu0 0.0
    %1384 = vmatpush2.msra.mxu0 0.0
    %1385 = vmatprep.subr.mxu0 0.0
    %1386 = vmatpush2.msra.mxu0 0.0
    %1387 = vmatprep.mubr.f32.mxu0 0.0
    %1388 = vmatmul.mubr.f32.gmra.mxu0 %v1321
    %v1389 = vpop.f32.mrf.mxu0
    %v1390 = vadd.f32 0.0, %v1389
    %v1391 = vpop.f32.mrf.mxu0
    %1392 = vdwg.mxu0
    %v1393 = vadd.f32 %v1320, %v1390
    %v1394 = vmul.f32 %v1393, 0.5
    %v1395 = vtanh.pop %v1394
    %v1396 = vmul.f32 %v1395, 0.5
    %v1397 = vadd.f32 %v1396, 0.5
    %v1398 = vtanh.pop %v1393
    %v1399 = vmul.f32 %v1397, %v1308
    %1401 = vrot.lane.b32.xlu0 %v1398, 64
    %v1402 = vpop.permute.xlu0 %1401
    %v1404 = vmul.f32 %v1397, %v1402
    %1406 = vrot.lane.b32.xlu0 %v1404, 32
    %v1407 = vpop.permute.xlu0 %1406
    %v1409 = vadd.f32 %v1399, %v1407
    %v1410 = vtanh.pop %v1409
    %1412 = vrot.lane.b32.xlu0 %v1410, 64
    %v1413 = vpop.permute.xlu0 %1412
    %v1415 = vmul.f32 %v1397, %v1413
    %1417 = vrot.lane.b32.xlu0 %v1415, 32
    %v1418 = vpop.permute.xlu0 %1417
    %1420 = vst.msk [vmem:[#allocation3 + $0xb] sm:$0x1] %vm308, %v1418
    %v1421 = vld [vmem:[#allocation2 + $0xc] sm:$0x1]
    %v1422 = vsel %vm207, %v1418, 0
    %1424 = vmatprep.subr.mxu0 0.0
    %1425 = vmatpush1.msra.mxu0 0.0
    %1426 = vmatprep.subr.mxu0 0.0
    %1427 = vmatpush1.msra.mxu0 0.0
    %1428 = vmatprep.subr.mxu0 0.0
    %1429 = vmatpush1.msra.mxu0 0.0
    %1430 = vmatprep.subr.mxu0 0.0
    %1431 = vmatpush1.msra.mxu0 0.0
    %1432 = vmatprep.subr.mxu0 0.0
    %1433 = vmatpush1.msra.mxu0 0.0
    %1434 = vmatprep.subr.mxu0 0.0
    %1435 = vmatpush1.msra.mxu0 0.0
    %1436 = vmatprep.subr.mxu0 0.0
    %1437 = vmatpush1.msra.mxu0 0.0
    %1438 = vmatprep.subr.mxu0 0.0
    %1439 = vmatpush1.msra.mxu0 0.0
    %1440 = vmatprep.subr.mxu0 0.0
    %1441 = vmatpush1.msra.mxu0 0.0
    %1442 = vmatprep.subr.mxu0 0.0
    %1443 = vmatpush1.msra.mxu0 0.0
    %1444 = vmatprep.subr.mxu0 0.0
    %1445 = vmatpush1.msra.mxu0 0.0
    %1446 = vmatprep.subr.mxu0 0.0
    %1447 = vmatpush1.msra.mxu0 0.0
    %1448 = vmatprep.subr.mxu0 0.0
    %1449 = vmatpush1.msra.mxu0 %v205
    %1450 = vmatprep.subr.mxu0 0.0
    %1451 = vmatpush1.msra.mxu0 %v204
    %1452 = vmatprep.subr.mxu0 0.0
    %1453 = vmatpush1.msra.mxu0 %v203
    %1454 = vmatprep.subr.mxu0 0.0
    %1455 = vmatpush1.msra.mxu0 %v202
    %1456 = vmatprep.subr.mxu0 0.0
    %1457 = vmatpush2.msra.mxu0 0.0
    %1458 = vmatprep.subr.mxu0 0.0
    %1459 = vmatpush2.msra.mxu0 0.0
    %1460 = vmatprep.subr.mxu0 0.0
    %1461 = vmatpush2.msra.mxu0 0.0
    %1462 = vmatprep.subr.mxu0 0.0
    %1463 = vmatpush2.msra.mxu0 0.0
    %1464 = vmatprep.subr.mxu0 0.0
    %1465 = vmatpush2.msra.mxu0 0.0
    %1466 = vmatprep.subr.mxu0 0.0
    %1467 = vmatpush2.msra.mxu0 0.0
    %1468 = vmatprep.subr.mxu0 0.0
    %1469 = vmatpush2.msra.mxu0 0.0
    %1470 = vmatprep.subr.mxu0 0.0
    %1471 = vmatpush2.msra.mxu0 0.0
    %1472 = vmatprep.subr.mxu0 0.0
    %1473 = vmatpush2.msra.mxu0 0.0
    %1474 = vmatprep.subr.mxu0 0.0
    %1475 = vmatpush2.msra.mxu0 0.0
    %1476 = vmatprep.subr.mxu0 0.0
    %1477 = vmatpush2.msra.mxu0 0.0
    %1478 = vmatprep.subr.mxu0 0.0
    %1479 = vmatpush2.msra.mxu0 0.0
    %1480 = vmatprep.subr.mxu0 0.0
    %1481 = vmatpush2.msra.mxu0 0.0
    %1482 = vmatprep.subr.mxu0 0.0
    %1483 = vmatpush2.msra.mxu0 0.0
    %1484 = vmatprep.subr.mxu0 0.0
    %1485 = vmatpush2.msra.mxu0 0.0
    %1486 = vmatprep.subr.mxu0 0.0
    %1487 = vmatpush2.msra.mxu0 0.0
    %1488 = vmatprep.mubr.f32.mxu0 0.0
    %1489 = vmatmul.mubr.f32.gmra.mxu0 %v1422
    %v1490 = vpop.f32.mrf.mxu0
    %v1491 = vadd.f32 0.0, %v1490
    %v1492 = vpop.f32.mrf.mxu0
    %1493 = vdwg.mxu0
    %v1494 = vadd.f32 %v1421, %v1491
    %v1495 = vmul.f32 %v1494, 0.5
    %v1496 = vtanh.pop %v1495
    %v1497 = vmul.f32 %v1496, 0.5
    %v1498 = vadd.f32 %v1497, 0.5
    %v1499 = vtanh.pop %v1494
    %v1500 = vmul.f32 %v1498, %v1409
    %1502 = vrot.lane.b32.xlu0 %v1499, 64
    %v1503 = vpop.permute.xlu0 %1502
    %v1505 = vmul.f32 %v1498, %v1503
    %1507 = vrot.lane.b32.xlu0 %v1505, 32
    %v1508 = vpop.permute.xlu0 %1507
    %v1510 = vadd.f32 %v1500, %v1508
    %v1511 = vtanh.pop %v1510
    %1513 = vrot.lane.b32.xlu0 %v1511, 64
    %v1514 = vpop.permute.xlu0 %1513
    %v1516 = vmul.f32 %v1498, %v1514
    %1518 = vrot.lane.b32.xlu0 %v1516, 32
    %v1519 = vpop.permute.xlu0 %1518
    %1521 = vst.msk [vmem:[#allocation3 + $0xc] sm:$0x1] %vm308, %v1519
    %v1522 = vld [vmem:[#allocation2 + $0xd] sm:$0x1]
    %v1523 = vsel %vm207, %v1519, 0
    %1525 = vmatprep.subr.mxu0 0.0
    %1526 = vmatpush1.msra.mxu0 0.0
    %1527 = vmatprep.subr.mxu0 0.0
    %1528 = vmatpush1.msra.mxu0 0.0
    %1529 = vmatprep.subr.mxu0 0.0
    %1530 = vmatpush1.msra.mxu0 0.0
    %1531 = vmatprep.subr.mxu0 0.0
    %1532 = vmatpush1.msra.mxu0 0.0
    %1533 = vmatprep.subr.mxu0 0.0
    %1534 = vmatpush1.msra.mxu0 0.0
    %1535 = vmatprep.subr.mxu0 0.0
    %1536 = vmatpush1.msra.mxu0 0.0
    %1537 = vmatprep.subr.mxu0 0.0
    %1538 = vmatpush1.msra.mxu0 0.0
    %1539 = vmatprep.subr.mxu0 0.0
    %1540 = vmatpush1.msra.mxu0 0.0
    %1541 = vmatprep.subr.mxu0 0.0
    %1542 = vmatpush1.msra.mxu0 0.0
    %1543 = vmatprep.subr.mxu0 0.0
    %1544 = vmatpush1.msra.mxu0 0.0
    %1545 = vmatprep.subr.mxu0 0.0
    %1546 = vmatpush1.msra.mxu0 0.0
    %1547 = vmatprep.subr.mxu0 0.0
    %1548 = vmatpush1.msra.mxu0 0.0
    %1549 = vmatprep.subr.mxu0 0.0
    %1550 = vmatpush1.msra.mxu0 %v205
    %1551 = vmatprep.subr.mxu0 0.0
    %1552 = vmatpush1.msra.mxu0 %v204
    %1553 = vmatprep.subr.mxu0 0.0
    %1554 = vmatpush1.msra.mxu0 %v203
    %1555 = vmatprep.subr.mxu0 0.0
    %1556 = vmatpush1.msra.mxu0 %v202
    %1557 = vmatprep.subr.mxu0 0.0
    %1558 = vmatpush2.msra.mxu0 0.0
    %1559 = vmatprep.subr.mxu0 0.0
    %1560 = vmatpush2.msra.mxu0 0.0
    %1561 = vmatprep.subr.mxu0 0.0
    %1562 = vmatpush2.msra.mxu0 0.0
    %1563 = vmatprep.subr.mxu0 0.0
    %1564 = vmatpush2.msra.mxu0 0.0
    %1565 = vmatprep.subr.mxu0 0.0
    %1566 = vmatpush2.msra.mxu0 0.0
    %1567 = vmatprep.subr.mxu0 0.0
    %1568 = vmatpush2.msra.mxu0 0.0
    %1569 = vmatprep.subr.mxu0 0.0
    %1570 = vmatpush2.msra.mxu0 0.0
    %1571 = vmatprep.subr.mxu0 0.0
    %1572 = vmatpush2.msra.mxu0 0.0
    %1573 = vmatprep.subr.mxu0 0.0
    %1574 = vmatpush2.msra.mxu0 0.0
    %1575 = vmatprep.subr.mxu0 0.0
    %1576 = vmatpush2.msra.mxu0 0.0
    %1577 = vmatprep.subr.mxu0 0.0
    %1578 = vmatpush2.msra.mxu0 0.0
    %1579 = vmatprep.subr.mxu0 0.0
    %1580 = vmatpush2.msra.mxu0 0.0
    %1581 = vmatprep.subr.mxu0 0.0
    %1582 = vmatpush2.msra.mxu0 0.0
    %1583 = vmatprep.subr.mxu0 0.0
    %1584 = vmatpush2.msra.mxu0 0.0
    %1585 = vmatprep.subr.mxu0 0.0
    %1586 = vmatpush2.msra.mxu0 0.0
    %1587 = vmatprep.subr.mxu0 0.0
    %1588 = vmatpush2.msra.mxu0 0.0
    %1589 = vmatprep.mubr.f32.mxu0 0.0
    %1590 = vmatmul.mubr.f32.gmra.mxu0 %v1523
    %v1591 = vpop.f32.mrf.mxu0
    %v1592 = vadd.f32 0.0, %v1591
    %v1593 = vpop.f32.mrf.mxu0
    %1594 = vdwg.mxu0
    %v1595 = vadd.f32 %v1522, %v1592
    %v1596 = vmul.f32 %v1595, 0.5
    %v1597 = vtanh.pop %v1596
    %v1598 = vmul.f32 %v1597, 0.5
    %v1599 = vadd.f32 %v1598, 0.5
    %v1600 = vtanh.pop %v1595
    %v1601 = vmul.f32 %v1599, %v1510
    %1603 = vrot.lane.b32.xlu0 %v1600, 64
    %v1604 = vpop.permute.xlu0 %1603
    %v1606 = vmul.f32 %v1599, %v1604
    %1608 = vrot.lane.b32.xlu0 %v1606, 32
    %v1609 = vpop.permute.xlu0 %1608
    %v1611 = vadd.f32 %v1601, %v1609
    %v1612 = vtanh.pop %v1611
    %1614 = vrot.lane.b32.xlu0 %v1612, 64
    %v1615 = vpop.permute.xlu0 %1614
    %v1617 = vmul.f32 %v1599, %v1615
    %1619 = vrot.lane.b32.xlu0 %v1617, 32
    %v1620 = vpop.permute.xlu0 %1619
    %1622 = vst.msk [vmem:[#allocation3 + $0xd] sm:$0x1] %vm308, %v1620
    %v1623 = vld [vmem:[#allocation2 + $0xe] sm:$0x1]
    %v1624 = vsel %vm207, %v1620, 0
    %1626 = vmatprep.subr.mxu0 0.0
    %1627 = vmatpush1.msra.mxu0 0.0
    %1628 = vmatprep.subr.mxu0 0.0
    %1629 = vmatpush1.msra.mxu0 0.0
    %1630 = vmatprep.subr.mxu0 0.0
    %1631 = vmatpush1.msra.mxu0 0.0
    %1632 = vmatprep.subr.mxu0 0.0
    %1633 = vmatpush1.msra.mxu0 0.0
    %1634 = vmatprep.subr.mxu0 0.0
    %1635 = vmatpush1.msra.mxu0 0.0
    %1636 = vmatprep.subr.mxu0 0.0
    %1637 = vmatpush1.msra.mxu0 0.0
    %1638 = vmatprep.subr.mxu0 0.0
    %1639 = vmatpush1.msra.mxu0 0.0
    %1640 = vmatprep.subr.mxu0 0.0
    %1641 = vmatpush1.msra.mxu0 0.0
    %1642 = vmatprep.subr.mxu0 0.0
    %1643 = vmatpush1.msra.mxu0 0.0
    %1644 = vmatprep.subr.mxu0 0.0
    %1645 = vmatpush1.msra.mxu0 0.0
    %1646 = vmatprep.subr.mxu0 0.0
    %1647 = vmatpush1.msra.mxu0 0.0
    %1648 = vmatprep.subr.mxu0 0.0
    %1649 = vmatpush1.msra.mxu0 0.0
    %1650 = vmatprep.subr.mxu0 0.0
    %1651 = vmatpush1.msra.mxu0 %v205
    %1652 = vmatprep.subr.mxu0 0.0
    %1653 = vmatpush1.msra.mxu0 %v204
    %1654 = vmatprep.subr.mxu0 0.0
    %1655 = vmatpush1.msra.mxu0 %v203
    %1656 = vmatprep.subr.mxu0 0.0
    %1657 = vmatpush1.msra.mxu0 %v202
    %1658 = vmatprep.subr.mxu0 0.0
    %1659 = vmatpush2.msra.mxu0 0.0
    %1660 = vmatprep.subr.mxu0 0.0
    %1661 = vmatpush2.msra.mxu0 0.0
    %1662 = vmatprep.subr.mxu0 0.0
    %1663 = vmatpush2.msra.mxu0 0.0
    %1664 = vmatprep.subr.mxu0 0.0
    %1665 = vmatpush2.msra.mxu0 0.0
    %1666 = vmatprep.subr.mxu0 0.0
    %1667 = vmatpush2.msra.mxu0 0.0
    %1668 = vmatprep.subr.mxu0 0.0
    %1669 = vmatpush2.msra.mxu0 0.0
    %1670 = vmatprep.subr.mxu0 0.0
    %1671 = vmatpush2.msra.mxu0 0.0
    %1672 = vmatprep.subr.mxu0 0.0
    %1673 = vmatpush2.msra.mxu0 0.0
    %1674 = vmatprep.subr.mxu0 0.0
    %1675 = vmatpush2.msra.mxu0 0.0
    %1676 = vmatprep.subr.mxu0 0.0
    %1677 = vmatpush2.msra.mxu0 0.0
    %1678 = vmatprep.subr.mxu0 0.0
    %1679 = vmatpush2.msra.mxu0 0.0
    %1680 = vmatprep.subr.mxu0 0.0
    %1681 = vmatpush2.msra.mxu0 0.0
    %1682 = vmatprep.subr.mxu0 0.0
    %1683 = vmatpush2.msra.mxu0 0.0
    %1684 = vmatprep.subr.mxu0 0.0
    %1685 = vmatpush2.msra.mxu0 0.0
    %1686 = vmatprep.subr.mxu0 0.0
    %1687 = vmatpush2.msra.mxu0 0.0
    %1688 = vmatprep.subr.mxu0 0.0
    %1689 = vmatpush2.msra.mxu0 0.0
    %1690 = vmatprep.mubr.f32.mxu0 0.0
    %1691 = vmatmul.mubr.f32.gmra.mxu0 %v1624
    %v1692 = vpop.f32.mrf.mxu0
    %v1693 = vadd.f32 0.0, %v1692
    %v1694 = vpop.f32.mrf.mxu0
    %1695 = vdwg.mxu0
    %v1696 = vadd.f32 %v1623, %v1693
    %v1697 = vmul.f32 %v1696, 0.5
    %v1698 = vtanh.pop %v1697
    %v1699 = vmul.f32 %v1698, 0.5
    %v1700 = vadd.f32 %v1699, 0.5
    %v1701 = vtanh.pop %v1696
    %v1702 = vmul.f32 %v1700, %v1611
    %1704 = vrot.lane.b32.xlu0 %v1701, 64
    %v1705 = vpop.permute.xlu0 %1704
    %v1707 = vmul.f32 %v1700, %v1705
    %1709 = vrot.lane.b32.xlu0 %v1707, 32
    %v1710 = vpop.permute.xlu0 %1709
    %v1712 = vadd.f32 %v1702, %v1710
    %v1713 = vtanh.pop %v1712
    %1715 = vrot.lane.b32.xlu0 %v1713, 64
    %v1716 = vpop.permute.xlu0 %1715
    %v1718 = vmul.f32 %v1700, %v1716
    %1720 = vrot.lane.b32.xlu0 %v1718, 32
    %v1721 = vpop.permute.xlu0 %1720
    %1723 = vst.msk [vmem:[#allocation3 + $0xe] sm:$0x1] %vm308, %v1721
    %v1724 = vld [vmem:[#allocation2 + $0xf] sm:$0x1]
    %v1725 = vsel %vm207, %v1721, 0
    %1727 = vmatprep.subr.mxu0 0.0
    %1728 = vmatpush1.msra.mxu0 0.0
    %1729 = vmatprep.subr.mxu0 0.0
    %1730 = vmatpush1.msra.mxu0 0.0
    %1731 = vmatprep.subr.mxu0 0.0
    %1732 = vmatpush1.msra.mxu0 0.0
    %1733 = vmatprep.subr.mxu0 0.0
    %1734 = vmatpush1.msra.mxu0 0.0
    %1735 = vmatprep.subr.mxu0 0.0
    %1736 = vmatpush1.msra.mxu0 0.0
    %1737 = vmatprep.subr.mxu0 0.0
    %1738 = vmatpush1.msra.mxu0 0.0
    %1739 = vmatprep.subr.mxu0 0.0
    %1740 = vmatpush1.msra.mxu0 0.0
    %1741 = vmatprep.subr.mxu0 0.0
    %1742 = vmatpush1.msra.mxu0 0.0
    %1743 = vmatprep.subr.mxu0 0.0
    %1744 = vmatpush1.msra.mxu0 0.0
    %1745 = vmatprep.subr.mxu0 0.0
    %1746 = vmatpush1.msra.mxu0 0.0
    %1747 = vmatprep.subr.mxu0 0.0
    %1748 = vmatpush1.msra.mxu0 0.0
    %1749 = vmatprep.subr.mxu0 0.0
    %1750 = vmatpush1.msra.mxu0 0.0
    %1751 = vmatprep.subr.mxu0 0.0
    %1752 = vmatpush1.msra.mxu0 %v205
    %1753 = vmatprep.subr.mxu0 0.0
    %1754 = vmatpush1.msra.mxu0 %v204
    %1755 = vmatprep.subr.mxu0 0.0
    %1756 = vmatpush1.msra.mxu0 %v203
    %1757 = vmatprep.subr.mxu0 0.0
    %1758 = vmatpush1.msra.mxu0 %v202
    %1759 = vmatprep.subr.mxu0 0.0
    %1760 = vmatpush2.msra.mxu0 0.0
    %1761 = vmatprep.subr.mxu0 0.0
    %1762 = vmatpush2.msra.mxu0 0.0
    %1763 = vmatprep.subr.mxu0 0.0
    %1764 = vmatpush2.msra.mxu0 0.0
    %1765 = vmatprep.subr.mxu0 0.0
    %1766 = vmatpush2.msra.mxu0 0.0
    %1767 = vmatprep.subr.mxu0 0.0
    %1768 = vmatpush2.msra.mxu0 0.0
    %1769 = vmatprep.subr.mxu0 0.0
    %1770 = vmatpush2.msra.mxu0 0.0
    %1771 = vmatprep.subr.mxu0 0.0
    %1772 = vmatpush2.msra.mxu0 0.0
    %1773 = vmatprep.subr.mxu0 0.0
    %1774 = vmatpush2.msra.mxu0 0.0
    %1775 = vmatprep.subr.mxu0 0.0
    %1776 = vmatpush2.msra.mxu0 0.0
    %1777 = vmatprep.subr.mxu0 0.0
    %1778 = vmatpush2.msra.mxu0 0.0
    %1779 = vmatprep.subr.mxu0 0.0
    %1780 = vmatpush2.msra.mxu0 0.0
    %1781 = vmatprep.subr.mxu0 0.0
    %1782 = vmatpush2.msra.mxu0 0.0
    %1783 = vmatprep.subr.mxu0 0.0
    %1784 = vmatpush2.msra.mxu0 0.0
    %1785 = vmatprep.subr.mxu0 0.0
    %1786 = vmatpush2.msra.mxu0 0.0
    %1787 = vmatprep.subr.mxu0 0.0
    %1788 = vmatpush2.msra.mxu0 0.0
    %1789 = vmatprep.subr.mxu0 0.0
    %1790 = vmatpush2.msra.mxu0 0.0
    %1791 = vmatprep.mubr.f32.mxu0 0.0
    %1792 = vmatmul.mubr.f32.gmra.mxu0 %v1725
    %v1793 = vpop.f32.mrf.mxu0
    %v1794 = vadd.f32 0.0, %v1793
    %v1795 = vpop.f32.mrf.mxu0
    %1796 = vdwg.mxu0
    %v1797 = vadd.f32 %v1724, %v1794
    %v1798 = vmul.f32 %v1797, 0.5
    %v1799 = vtanh.pop %v1798
    %v1800 = vmul.f32 %v1799, 0.5
    %v1801 = vadd.f32 %v1800, 0.5
    %v1802 = vtanh.pop %v1797
    %v1803 = vmul.f32 %v1801, %v1712
    %1805 = vrot.lane.b32.xlu0 %v1802, 64
    %v1806 = vpop.permute.xlu0 %1805
    %v1808 = vmul.f32 %v1801, %v1806
    %1810 = vrot.lane.b32.xlu0 %v1808, 32
    %v1811 = vpop.permute.xlu0 %1810
    %v1813 = vadd.f32 %v1803, %v1811
    %v1814 = vtanh.pop %v1813
    %1816 = vrot.lane.b32.xlu0 %v1814, 64
    %v1817 = vpop.permute.xlu0 %1816
    %v1819 = vmul.f32 %v1801, %v1817
    %1821 = vrot.lane.b32.xlu0 %v1819, 32
    %v1822 = vpop.permute.xlu0 %1821
    %1824 = vst.msk [vmem:[#allocation3 + $0xf] sm:$0x1] %vm308, %v1822
    %v1825 = vld [vmem:[#allocation3] sm:$0xff]
    %v1826 = vld [vmem:[#allocation3 + $0x8] sm:$0xff]
    %v1827 = vld [vmem:[%s8] sm:$0x1]
    %v1828 = vld [vmem:[%s9] sm:$0x1]
    %v1829 = vsel %vm207, %v1825, 0.0
    %v1830 = vsel %vm207, %v1826, 0.0
    %v1831 = vadd.f32 %v1829, %v1830
    %v1832 = vrot.slane %v1831, 4
    %v1833 = vadd.f32 %v1831, %v1832
    %v1834 = vrot.slane %v1833, 2
    %v1835 = vadd.f32 %v1833, %v1834
    %v1836 = vrot.slane %v1835, 1
    %v1837 = vadd.f32 %v1835, %v1836
    %v1838 = vmul.f32 %v1837, %v67
    %v1839 = vsub.f32 %v1825, %v1838
    %v1840 = vsub.f32 %v1826, %v1838
    %v1841 = vmul.f32 %v1839, %v1839
    %v1842 = vmul.f32 %v1840, %v1840
    %v1843 = vsel %vm207, %v1841, 0.0
    %v1844 = vsel %vm207, %v1842, 0.0
    %v1845 = vadd.f32 %v1843, %v1844
    %v1846 = vrot.slane %v1845, 4
    %v1847 = vadd.f32 %v1845, %v1846
    %v1848 = vrot.slane %v1847, 2
    %v1849 = vadd.f32 %v1847, %v1848
    %v1850 = vrot.slane %v1849, 1
    %v1851 = vadd.f32 %v1849, %v1850
    %v1852 = vmul.f32 %v1851, %v67
    %v1853 = vadd.f32 %v1852, 1e-05
    %v1854 = vrsqrt.pop %v1853
    %v1855 = vmul.f32 %v1839, %v1854
    %v1856 = vmul.f32 %v1840, %v1854
    %v1858 = vlaneseq
    %v1859 = vshrl.u32 %v1858, 7
    %v1860 = vsub.s32 0, %v1859
    %v1861 = vrot.slane %v1827, %v1860
    %v1863 = vmul.f32 %v1855, %v1861
    %v1864 = vmul.f32 %v1856, %v1861
    %v1866 = vlaneseq
    %v1867 = vshrl.u32 %v1866, 7
    %v1868 = vsub.s32 0, %v1867
    %v1869 = vrot.slane %v1828, %v1868
    %v1871 = vadd.f32 %v1863, %v1869
    %v1872 = vadd.f32 %v1864, %v1869
    %v1873 = vld [vmem:[%s10] sm:$0x1]
    %v1875 = vlaneseq
    %v1876 = vshrl.u32 %v1875, 7
    %v1877 = vsub.s32 0, %v1876
    %v1878 = vrot.slane %v1873, %v1877
    %v1880 = vmul.f32 %v1871, %v1878
    %v1881 = vmul.f32 %v1872, %v1878
    %v1882 = vsel %vm207, %v1880, 0.0
    %1883 = vadd.xlane.f32.xlu0 %v1882
    %v1884 = vpop.xlane.xlu0 %1883
    %v1885 = vsel %vm207, %v1881, 0.0
    %1886 = vadd.xlane.f32.xlu0 %v1885
    %v1887 = vpop.xlane.xlu0 %1886
    %v1888 = vld [vmem:[#allocation4] sm:$0x1]
    %v1890 = vlaneseq
    %v1891 = vshrl.u32 %v1890, 7
    %v1892 = vsub.s32 0, %v1891
    %v1893 = vrot.slane %v1888, %v1892
    %v1895 = vadd.f32 %v1884, %v1893
    %v1896 = vadd.f32 %v1887, %v1893
    %vm1897 = vcmask 7168
    %1898 = vst.msk [vmem:[%s12] sm:$0xff] %vm1897, %v1895
    %1899 = vst.msk [vmem:[%s12 + $0x8] sm:$0xff] %vm1897, %v1896
    // Predicated region
    $region54: #{tpu_custom_call.1} parent=1 // pred_check
      _
    $region55: #{tpu_custom_call.1} parent=1 // pred_check_branch
      %1901 = sbr.rel (0) target = $region57
    $region56: #{tpu_custom_call.1} parent=1 // pred_region
      _
    $region57: #{tpu_custom_call.1} parent=1 // pred_fallthru
      _
    // Predicated region
    $region58: #{tpu_custom_call.1} parent=1 // pred_check
      _
    $region59: #{tpu_custom_call.1} parent=1 // pred_check_branch
      %1903 = sbr.rel (0) target = $region61
    $region60: #{tpu_custom_call.1} parent=1 // pred_region
      _
    $region61: #{tpu_custom_call.1} parent=1 // pred_fallthru
      _
    %1904 = vsyncpa [#allocation6], 1

</llo_original>
